<compile_context>
chip_gen: v6e
topology: v6e:2x2x1
jax: 0.10.0
libtpu: 0.0.40
codegen_flags: <defaults>
</compile_context>

<pallas_src>
import functools

import jax
import jax.numpy as jnp
from jax.experimental import pallas as pl
from jax.experimental.pallas import tpu as pltpu


_VMEM = functools.partial(pl.BlockSpec, memory_space=pltpu.MemorySpace.VMEM)
_VMEM_LIMIT = 32 * 1024 * 1024  # safe on v5e/v6e/v7x; demo working set << 1 MiB


# ---------------------------- Pallas kernel -----------------------------

def encoder_kernel(num_layers, gcn_hidden, fc_hidden,
                   a_ref, x_ref, p_ref, *refs):
    """Fully fused MVGRLg Encoder forward for both (identical-aug) views.

    refs = [w_0, b_0, alpha_0, ..., w_{L-1}, b_{L-1}, alpha_{L-1},      # GCN
            w1p_n, wsp_n, w2_n, w3_n, b1_n, b2_n, b3_n, bs_n,           # mlp1
            w1p_g, wsp_g, w2_g, w3_g, b1_g, b2_g, b3_g, bs_g,           # mlp2
            h_ref, g_ref]                                                # outs
    GCN weights are view-batched (layer 0: [W_g1 | W_g2]; layers >0:
    block-diag).  FC weights are host-packed so each layer's view-batched
    z_l [N, 2H] feeds the first Linear + shortcut directly (per-layer
    accumulation), keeping every in-kernel tensor slice sublane-aligned.
    """
    n_gcn = 3 * num_layers
    gcn_refs = refs[:n_gcn]
    (w1p_n, wsp_n, w2_n, w3_n, b1_n, b2_n, b3_n, bs_n) = refs[n_gcn:n_gcn + 8]
    (w1p_g, wsp_g, w2_g, w3_g, b1_g, b2_g, b3_g, bs_g) = refs[n_gcn + 8:n_gcn + 16]
    h_ref, g_ref = refs[-2], refs[-1]

    two_gh = 2 * gcn_hidden       # view-batched GCN width
    two_fh = 2 * fc_hidden        # view-batched FC width

    a = a_ref[...]                # [N, N]  bf16
    p = p_ref[...]                # [G, N]  f32 (pool kept in f32 for parity)
    h = x_ref[...]                # [N, F]  bf16
    n = a.shape[0]
    g_rows = p.shape[0]

    # First-Linear / shortcut accumulators of the two FC heads (f32).
    acc_h1 = jnp.zeros((n, two_fh), jnp.float32)
    acc_hs = jnp.zeros((n, two_fh), jnp.float32)
    acc_g1 = jnp.zeros((g_rows, two_fh), jnp.float32)
    acc_gs = jnp.zeros((g_rows, two_fh), jnp.float32)

    for l in range(num_layers):
        w = gcn_refs[3 * l][...]            # bf16 view-batched weight
        b = gcn_refs[3 * l + 1][...]        # f32 [1, 2H]
        alpha = gcn_refs[3 * l + 2][...]    # f32 [1, 2H]

        # GCNConv: A_norm @ (H @ W) + b, then PReLU (f32 elementwise math).
        hw = jnp.dot(h, w, preferred_element_type=jnp.float32)
        z = jnp.dot(a, hw.astype(a.dtype),
                    preferred_element_type=jnp.float32) + b
        z = jnp.maximum(z, 0.0) + alpha * jnp.minimum(z, 0.0)
        zb = z.astype(a.dtype)

        # global_add_pool for this layer (f32 operands -> closer to torch).
        g = jnp.dot(p, z, preferred_element_type=jnp.float32)   # [G, 2H]
        gb = g.astype(a.dtype)

        # FC heads, first Linear + shortcut, accumulated per layer (shared
        # operand zb / gb; sublane-aligned static row slices of the packed
        # weights; no [N, L*2H] concat, no 32/64-lane view slices).
        row = pl.ds(l * two_gh, two_gh)
        acc_h1 += jnp.dot(zb, w1p_n[row, :], preferred_element_type=jnp.float32)
        acc_hs += jnp.dot(zb, wsp_n[row, :], preferred_element_type=jnp.float32)
        acc_g1 += jnp.dot(gb, w1p_g[row, :], preferred_element_type=jnp.float32)
        acc_gs += jnp.dot(gb, wsp_g[row, :], preferred_element_type=jnp.float32)

        h = zb                              # next layer input (bf16 for MXU)

    def fc_tail(acc1, accs, w2, w3, b1, b2, b3, bs):
        # relu(L1) -> relu(L2) -> relu(L3) + shortcut  (view-batched weights).
        t = jnp.maximum(acc1 + b1[...], 0.0)
        t = jnp.maximum(jnp.dot(t.astype(jnp.bfloat16), w2[...],
                                preferred_element_type=jnp.float32) + b2[...], 0.0)
        t = jnp.maximum(jnp.dot(t.astype(jnp.bfloat16), w3[...],
                                preferred_element_type=jnp.float32) + b3[...], 0.0)
        return t + accs + bs[...]

    h_out = fc_tail(acc_h1, acc_hs, w2_n, w3_n, b1_n, b2_n, b3_n, bs_n)
    g_out = fc_tail(acc_g1, acc_gs, w2_g, w3_g, b1_g, b2_g, b3_g, bs_g)
    h_ref[...] = h_out.astype(h_ref.dtype)   # [N, 2*fc_hidden] bf16
    g_ref[...] = g_out.astype(g_ref.dtype)   # [G, 2*fc_hidden] bf16


# ------------------------------ wrapper ---------------------------------

def encoder_forward(x, a_norm, p, params, gcn_hidden, fc_hidden):
    """Single pallas_call for the whole Encoder forward (both views)."""
    fused_layers = params["gcn_fused"]
    m1 = params["mlp1_packed"]
    m2 = params["mlp2_packed"]
    num_layers = len(fused_layers)
    n, g = x.shape[0], p.shape[0]

    flat = []
    for (w, b, al) in fused_layers:
        flat += [w, b, al]
    args = ([a_norm.astype(jnp.bfloat16), x.astype(jnp.bfloat16),
             p.astype(jnp.float32)] + flat + list(m1) + list(m2))

    kernel = functools.partial(encoder_kernel, num_layers, gcn_hidden, fc_hidden)
    h_slab, g_slab = pl.pallas_call(
        kernel,
        out_shape=(jax.ShapeDtypeStruct((n, 2 * fc_hidden), jnp.bfloat16),
                   jax.ShapeDtypeStruct((g, 2 * fc_hidden), jnp.bfloat16)),
        in_specs=[_VMEM() for _ in args],
        out_specs=(_VMEM(), _VMEM()),
        compiler_params=pltpu.CompilerParams(vmem_limit_bytes=_VMEM_LIMIT),
    )(*args)

    h1, h2 = h_slab[:, :fc_hidden], h_slab[:, fc_hidden:]
    g1, g2 = g_slab[:, :fc_hidden], g_slab[:, fc_hidden:]
    return h1, h2, g1, g2


# ------------------------------- glue -----------------------------------

def build_norm_adj(edge_index, n):
    """Symmetric GCN normalization: D^{-1/2} (A + I) D^{-1/2} (dense)."""
    a = jnp.zeros((n, n), jnp.float32)
    a = a.at[edge_index[0], edge_index[1]].set(1.0)
    a = a.at[edge_index[1], edge_index[0]].set(1.0)
    a = a + jnp.eye(n, dtype=jnp.float32)
    dinv = jax.lax.rsqrt(a.sum(axis=1))
    return a * dinv[:, None] * dinv[None, :]


def build_pool_matrix(batch, num_graphs):
    return (batch[None, :] == jnp.arange(num_graphs)[:, None]).astype(jnp.float32)


def _blockdiag(a, b):
    za = jnp.zeros((a.shape[0], b.shape[1]), a.dtype)
    zb = jnp.zeros((b.shape[0], a.shape[1]), a.dtype)
    return jnp.concatenate(
        [jnp.concatenate([a, za], axis=1),
         jnp.concatenate([zb, b], axis=1)], axis=0)


def fuse_view_gcn_params(gcn1_layers, gcn2_layers):
    """Batch the two views' GCN weights: layer0 -> [W1|W2], deeper -> blockdiag.

    NOTE: once gcn_hidden >= 128 the block-diag form wastes half the MXU; at
    that point switch deeper layers to two per-view dots instead.
    """
    fused = []
    for idx, ((wa, ba, aa), (wb, bb, ab)) in enumerate(zip(gcn1_layers, gcn2_layers)):
        if idx == 0:
            w = jnp.concatenate([wa, wb], axis=1)
        else:
            w = _blockdiag(wa, wb)
        b = jnp.concatenate([ba, bb], axis=1)
        al = jnp.concatenate([aa, ab], axis=1)
        fused.append((w.astype(jnp.bfloat16), b, al))
    return fused


def pack_fc_params(fc, num_layers, gcn_hidden):
    """Pack a shared FC head for view-batched, per-GCN-layer accumulation.

    Returns (w1p, wsp, w2bd, w3bd, b1, b2, b3, bs) where
      w1p/wsp [L*2H, 2h]: row block l = blockdiag(W[l*H:(l+1)*H], same)
      w2bd/w3bd [2h, 2h]: blockdiag(W, W)  (same weights serve both views)
      biases duplicated along lanes to [1, 2h].
    """
    w1, b1, w2, b2, w3, b3, ws, bs = fc
    blocks_w1, blocks_ws = [], []
    for l in range(num_layers):
        rows = slice(l * gcn_hidden, (l + 1) * gcn_hidden)
        blocks_w1.append(_blockdiag(w1[rows, :], w1[rows, :]))
        blocks_ws.append(_blockdiag(ws[rows, :], ws[rows, :]))
    w1p = jnp.concatenate(blocks_w1, axis=0)
    wsp = jnp.concatenate(blocks_ws, axis=0)
    dup = lambda v: jnp.concatenate([v, v], axis=1)
    return (w1p.astype(jnp.bfloat16), wsp.astype(jnp.bfloat16),
            _blockdiag(w2, w2).astype(jnp.bfloat16),
            _blockdiag(w3, w3).astype(jnp.bfloat16),
            dup(b1), dup(b2), dup(b3), dup(bs))


def init_params(key, in_dim, gcn_hidden, fc_hidden, num_layers):
    def lin(k, di, do, scale=0.1):
        return jax.random.normal(k, (di, do), jnp.float32) * scale

    keys = iter(jax.random.split(key, 64))
    per_view = {}
    for name in ("gcn1", "gcn2"):
        layers, d = [], in_dim
        for _ in range(num_layers):
            w = lin(next(keys), d, gcn_hidden)
            b = jnp.zeros((1, gcn_hidden), jnp.float32)
            # nn.PReLU() default: one shared alpha = 0.25; materialized here as
            # a per-channel broadcast (identical at init).
            alpha = jnp.full((1, gcn_hidden), 0.25, jnp.float32)
            layers.append((w, b, alpha))
            d = gcn_hidden
        per_view[name] = layers

    gcn_fused = fuse_view_gcn_params(per_view["gcn1"], per_view["gcn2"])

    proj_in = num_layers * gcn_hidden
    mlps = {}
    for name in ("mlp1", "mlp2"):
        w1 = lin(next(keys), proj_in, fc_hidden)
        w2 = lin(next(keys), fc_hidden, fc_hidden)
        w3 = lin(next(keys), fc_hidden, fc_hidden)
        ws = lin(next(keys), proj_in, fc_hidden)
        zb = jnp.zeros((1, fc_hidden), jnp.float32)
        mlps[name] = (w1, zb, w2, zb, w3, zb, ws, zb)

    return {
        "gcn_fused": gcn_fused,
        "mlp1_packed": pack_fc_params(mlps["mlp1"], num_layers, gcn_hidden),
        "mlp2_packed": pack_fc_params(mlps["mlp2"], num_layers, gcn_hidden),
    }


if __name__ == "__main__":
    N, IN_DIM, HIDDEN, NUM_LAYERS, G = 16, 32, 32, 2, 2

    key = jax.random.PRNGKey(0)
    kx, kp = jax.random.split(key)

    # node features [N, F]
    x = jax.random.normal(kx, (N, IN_DIM), jnp.float32)

    # two graphs of 8 nodes each, ring topology within each graph
    src = jnp.arange(N, dtype=jnp.int32)
    dst = jnp.where(src % 8 == 7, src - 7, src + 1).astype(jnp.int32)
    edge_index = jnp.stack([src, dst])            # [2, 16]
    batch = jnp.concatenate([jnp.zeros(8, jnp.int32), jnp.ones(8, jnp.int32)])

    a_norm = build_norm_adj(edge_index, N)        # [N, N]
    p = build_pool_matrix(batch, G)               # [G, N]
    params = init_params(kp, IN_DIM, HIDDEN, HIDDEN, NUM_LAYERS)

    fwd = jax.jit(functools.partial(encoder_forward,
                                    gcn_hidden=HIDDEN, fc_hidden=HIDDEN))
    h1, h2, g1, g2 = fwd(x, a_norm, p, params)
    for t in (h1, h2, g1, g2):
        jax.block_until_ready(t)

    assert h1.shape == (N, HIDDEN) and h2.shape == (N, HIDDEN)
    assert g1.shape == (G, HIDDEN) and g2.shape == (G, HIDDEN)
    print("KERNEL_OK")
</pallas_src>

<mosaic_0001>
module attributes {stable_mosaic.version = 11 : i64} {
  func.func @encoder_kernel(%arg0: memref<16x16xbf16, #tpu.memory_space<vmem>>, %arg1: memref<16x32xbf16, #tpu.memory_space<vmem>>, %arg2: memref<2x16xf32, #tpu.memory_space<vmem>>, %arg3: memref<32x64xbf16, #tpu.memory_space<vmem>>, %arg4: memref<1x64xf32, #tpu.memory_space<vmem>>, %arg5: memref<1x64xf32, #tpu.memory_space<vmem>>, %arg6: memref<64x64xbf16, #tpu.memory_space<vmem>>, %arg7: memref<1x64xf32, #tpu.memory_space<vmem>>, %arg8: memref<1x64xf32, #tpu.memory_space<vmem>>, %arg9: memref<128x64xbf16, #tpu.memory_space<vmem>>, %arg10: memref<128x64xbf16, #tpu.memory_space<vmem>>, %arg11: memref<64x64xbf16, #tpu.memory_space<vmem>>, %arg12: memref<64x64xbf16, #tpu.memory_space<vmem>>, %arg13: memref<1x64xf32, #tpu.memory_space<vmem>>, %arg14: memref<1x64xf32, #tpu.memory_space<vmem>>, %arg15: memref<1x64xf32, #tpu.memory_space<vmem>>, %arg16: memref<1x64xf32, #tpu.memory_space<vmem>>, %arg17: memref<128x64xbf16, #tpu.memory_space<vmem>>, %arg18: memref<128x64xbf16, #tpu.memory_space<vmem>>, %arg19: memref<64x64xbf16, #tpu.memory_space<vmem>>, %arg20: memref<64x64xbf16, #tpu.memory_space<vmem>>, %arg21: memref<1x64xf32, #tpu.memory_space<vmem>>, %arg22: memref<1x64xf32, #tpu.memory_space<vmem>>, %arg23: memref<1x64xf32, #tpu.memory_space<vmem>>, %arg24: memref<1x64xf32, #tpu.memory_space<vmem>>, %arg25: memref<16x64xbf16, #tpu.memory_space<vmem>>, %arg26: memref<2x64xbf16, #tpu.memory_space<vmem>>) attributes {dimension_semantics = [], scalar_prefetch = 0 : i64, scratch_operands = 0 : i64, tpu.core_type = #tpu.core_type<tc>} {
    %c0 = arith.constant 0 : index
    %c0_0 = arith.constant 0 : index
    %0 = vector.load %arg0[%c0, %c0_0] : memref<16x16xbf16, #tpu.memory_space<vmem>>, vector<16x16xbf16>
    %c0_1 = arith.constant 0 : index
    %c0_2 = arith.constant 0 : index
    %1 = vector.load %arg2[%c0_1, %c0_2] : memref<2x16xf32, #tpu.memory_space<vmem>>, vector<2x16xf32>
    %c0_3 = arith.constant 0 : index
    %c0_4 = arith.constant 0 : index
    %2 = vector.load %arg1[%c0_3, %c0_4] : memref<16x32xbf16, #tpu.memory_space<vmem>>, vector<16x32xbf16>
    %cst = arith.constant 0.000000e+00 : f32
    %3 = vector.broadcast %cst : f32 to vector<16x64xf32>
    %cst_5 = arith.constant 0.000000e+00 : f32
    %4 = vector.broadcast %cst_5 : f32 to vector<16x64xf32>
    %cst_6 = arith.constant 0.000000e+00 : f32
    %5 = vector.broadcast %cst_6 : f32 to vector<2x64xf32>
    %cst_7 = arith.constant 0.000000e+00 : f32
    %6 = vector.broadcast %cst_7 : f32 to vector<2x64xf32>
    %c0_8 = arith.constant 0 : index
    %c0_9 = arith.constant 0 : index
    %7 = vector.load %arg3[%c0_8, %c0_9] : memref<32x64xbf16, #tpu.memory_space<vmem>>, vector<32x64xbf16>
    %c0_10 = arith.constant 0 : index
    %c0_11 = arith.constant 0 : index
    %8 = vector.load %arg4[%c0_10, %c0_11] : memref<1x64xf32, #tpu.memory_space<vmem>>, vector<1x64xf32>
    %c0_12 = arith.constant 0 : index
    %c0_13 = arith.constant 0 : index
    %9 = vector.load %arg5[%c0_12, %c0_13] : memref<1x64xf32, #tpu.memory_space<vmem>>, vector<1x64xf32>
    %cst_14 = arith.constant dense<0.000000e+00> : vector<16x64xf32>
    %10 = tpu.matmul %2, %7, %cst_14 {dimension_numbers = #tpu.dot_dimension_numbers<[1], [0], [0], [1], [0, 0, 1, 1], [], []>} : vector<16x32xbf16>, vector<32x64xbf16>, vector<16x64xf32> -> vector<16x64xf32>
    %11 = arith.truncf %10 : vector<16x64xf32> to vector<16x64xbf16>
    %cst_15 = arith.constant dense<0.000000e+00> : vector<16x64xf32>
    %12 = tpu.matmul %0, %11, %cst_15 {dimension_numbers = #tpu.dot_dimension_numbers<[1], [0], [0], [1], [0, 0, 1, 1], [], []>} : vector<16x16xbf16>, vector<16x64xbf16>, vector<16x64xf32> -> vector<16x64xf32>
    %13 = vector.broadcast %8 : vector<1x64xf32> to vector<16x64xf32>
    %14 = arith.addf %12, %13 : vector<16x64xf32>
    %cst_16 = arith.constant 0.000000e+00 : f32
    %15 = vector.broadcast %cst_16 : f32 to vector<16x64xf32>
    %16 = arith.maximumf %14, %15 : vector<16x64xf32>
    %cst_17 = arith.constant 0.000000e+00 : f32
    %17 = vector.broadcast %cst_17 : f32 to vector<16x64xf32>
    %18 = arith.minimumf %14, %17 : vector<16x64xf32>
    %19 = vector.broadcast %9 : vector<1x64xf32> to vector<16x64xf32>
    %20 = arith.mulf %19, %18 : vector<16x64xf32>
    %21 = arith.addf %16, %20 : vector<16x64xf32>
    %22 = arith.truncf %21 : vector<16x64xf32> to vector<16x64xbf16>
    %cst_18 = arith.constant dense<0.000000e+00> : vector<2x64xf32>
    %23 = tpu.matmul %1, %21, %cst_18 {dimension_numbers = #tpu.dot_dimension_numbers<[1], [0], [0], [1], [0, 0, 1, 1], [], []>} : vector<2x16xf32>, vector<16x64xf32>, vector<2x64xf32> -> vector<2x64xf32>
    %24 = arith.truncf %23 : vector<2x64xf32> to vector<2x64xbf16>
    %c0_19 = arith.constant 0 : index
    %c0_20 = arith.constant 0 : index
    %25 = vector.load %arg9[%c0_19, %c0_20] : memref<128x64xbf16, #tpu.memory_space<vmem>>, vector<64x64xbf16>
    %cst_21 = arith.constant dense<0.000000e+00> : vector<16x64xf32>
    %26 = tpu.matmul %22, %25, %cst_21 {dimension_numbers = #tpu.dot_dimension_numbers<[1], [0], [0], [1], [0, 0, 1, 1], [], []>} : vector<16x64xbf16>, vector<64x64xbf16>, vector<16x64xf32> -> vector<16x64xf32>
    %27 = arith.addf %3, %26 : vector<16x64xf32>
    %c0_22 = arith.constant 0 : index
    %c0_23 = arith.constant 0 : index
    %28 = vector.load %arg10[%c0_22, %c0_23] : memref<128x64xbf16, #tpu.memory_space<vmem>>, vector<64x64xbf16>
    %cst_24 = arith.constant dense<0.000000e+00> : vector<16x64xf32>
    %29 = tpu.matmul %22, %28, %cst_24 {dimension_numbers = #tpu.dot_dimension_numbers<[1], [0], [0], [1], [0, 0, 1, 1], [], []>} : vector<16x64xbf16>, vector<64x64xbf16>, vector<16x64xf32> -> vector<16x64xf32>
    %30 = arith.addf %4, %29 : vector<16x64xf32>
    %c0_25 = arith.constant 0 : index
    %c0_26 = arith.constant 0 : index
    %31 = vector.load %arg17[%c0_25, %c0_26] : memref<128x64xbf16, #tpu.memory_space<vmem>>, vector<64x64xbf16>
    %cst_27 = arith.constant dense<0.000000e+00> : vector<2x64xf32>
    %32 = tpu.matmul %24, %31, %cst_27 {dimension_numbers = #tpu.dot_dimension_numbers<[1], [0], [0], [1], [0, 0, 1, 1], [], []>} : vector<2x64xbf16>, vector<64x64xbf16>, vector<2x64xf32> -> vector<2x64xf32>
    %33 = arith.addf %5, %32 : vector<2x64xf32>
    %c0_28 = arith.constant 0 : index
    %c0_29 = arith.constant 0 : index
    %34 = vector.load %arg18[%c0_28, %c0_29] : memref<128x64xbf16, #tpu.memory_space<vmem>>, vector<64x64xbf16>
    %cst_30 = arith.constant dense<0.000000e+00> : vector<2x64xf32>
    %35 = tpu.matmul %24, %34, %cst_30 {dimension_numbers = #tpu.dot_dimension_numbers<[1], [0], [0], [1], [0, 0, 1, 1], [], []>} : vector<2x64xbf16>, vector<64x64xbf16>, vector<2x64xf32> -> vector<2x64xf32>
    %36 = arith.addf %6, %35 : vector<2x64xf32>
    %c0_31 = arith.constant 0 : index
    %c0_32 = arith.constant 0 : index
    %37 = vector.load %arg6[%c0_31, %c0_32] : memref<64x64xbf16, #tpu.memory_space<vmem>>, vector<64x64xbf16>
    %c0_33 = arith.constant 0 : index
    %c0_34 = arith.constant 0 : index
    %38 = vector.load %arg7[%c0_33, %c0_34] : memref<1x64xf32, #tpu.memory_space<vmem>>, vector<1x64xf32>
    %c0_35 = arith.constant 0 : index
    %c0_36 = arith.constant 0 : index
    %39 = vector.load %arg8[%c0_35, %c0_36] : memref<1x64xf32, #tpu.memory_space<vmem>>, vector<1x64xf32>
    %cst_37 = arith.constant dense<0.000000e+00> : vector<16x64xf32>
    %40 = tpu.matmul %22, %37, %cst_37 {dimension_numbers = #tpu.dot_dimension_numbers<[1], [0], [0], [1], [0, 0, 1, 1], [], []>} : vector<16x64xbf16>, vector<64x64xbf16>, vector<16x64xf32> -> vector<16x64xf32>
    %41 = arith.truncf %40 : vector<16x64xf32> to vector<16x64xbf16>
    %cst_38 = arith.constant dense<0.000000e+00> : vector<16x64xf32>
    %42 = tpu.matmul %0, %41, %cst_38 {dimension_numbers = #tpu.dot_dimension_numbers<[1], [0], [0], [1], [0, 0, 1, 1], [], []>} : vector<16x16xbf16>, vector<16x64xbf16>, vector<16x64xf32> -> vector<16x64xf32>
    %43 = vector.broadcast %38 : vector<1x64xf32> to vector<16x64xf32>
    %44 = arith.addf %42, %43 : vector<16x64xf32>
    %cst_39 = arith.constant 0.000000e+00 : f32
    %45 = vector.broadcast %cst_39 : f32 to vector<16x64xf32>
    %46 = arith.maximumf %44, %45 : vector<16x64xf32>
    %cst_40 = arith.constant 0.000000e+00 : f32
    %47 = vector.broadcast %cst_40 : f32 to vector<16x64xf32>
    %48 = arith.minimumf %44, %47 : vector<16x64xf32>
    %49 = vector.broadcast %39 : vector<1x64xf32> to vector<16x64xf32>
    %50 = arith.mulf %49, %48 : vector<16x64xf32>
    %51 = arith.addf %46, %50 : vector<16x64xf32>
    %52 = arith.truncf %51 : vector<16x64xf32> to vector<16x64xbf16>
    %cst_41 = arith.constant dense<0.000000e+00> : vector<2x64xf32>
    %53 = tpu.matmul %1, %51, %cst_41 {dimension_numbers = #tpu.dot_dimension_numbers<[1], [0], [0], [1], [0, 0, 1, 1], [], []>} : vector<2x16xf32>, vector<16x64xf32>, vector<2x64xf32> -> vector<2x64xf32>
    %54 = arith.truncf %53 : vector<2x64xf32> to vector<2x64xbf16>
    %c64 = arith.constant 64 : index
    %c0_42 = arith.constant 0 : index
    %55 = vector.load %arg9[%c64, %c0_42] : memref<128x64xbf16, #tpu.memory_space<vmem>>, vector<64x64xbf16>
    %cst_43 = arith.constant dense<0.000000e+00> : vector<16x64xf32>
    %56 = tpu.matmul %52, %55, %cst_43 {dimension_numbers = #tpu.dot_dimension_numbers<[1], [0], [0], [1], [0, 0, 1, 1], [], []>} : vector<16x64xbf16>, vector<64x64xbf16>, vector<16x64xf32> -> vector<16x64xf32>
    %57 = arith.addf %27, %56 : vector<16x64xf32>
    %c64_44 = arith.constant 64 : index
    %c0_45 = arith.constant 0 : index
    %58 = vector.load %arg10[%c64_44, %c0_45] : memref<128x64xbf16, #tpu.memory_space<vmem>>, vector<64x64xbf16>
    %cst_46 = arith.constant dense<0.000000e+00> : vector<16x64xf32>
    %59 = tpu.matmul %52, %58, %cst_46 {dimension_numbers = #tpu.dot_dimension_numbers<[1], [0], [0], [1], [0, 0, 1, 1], [], []>} : vector<16x64xbf16>, vector<64x64xbf16>, vector<16x64xf32> -> vector<16x64xf32>
    %60 = arith.addf %30, %59 : vector<16x64xf32>
    %c64_47 = arith.constant 64 : index
    %c0_48 = arith.constant 0 : index
    %61 = vector.load %arg17[%c64_47, %c0_48] : memref<128x64xbf16, #tpu.memory_space<vmem>>, vector<64x64xbf16>
    %cst_49 = arith.constant dense<0.000000e+00> : vector<2x64xf32>
    %62 = tpu.matmul %54, %61, %cst_49 {dimension_numbers = #tpu.dot_dimension_numbers<[1], [0], [0], [1], [0, 0, 1, 1], [], []>} : vector<2x64xbf16>, vector<64x64xbf16>, vector<2x64xf32> -> vector<2x64xf32>
    %63 = arith.addf %33, %62 : vector<2x64xf32>
    %c64_50 = arith.constant 64 : index
    %c0_51 = arith.constant 0 : index
    %64 = vector.load %arg18[%c64_50, %c0_51] : memref<128x64xbf16, #tpu.memory_space<vmem>>, vector<64x64xbf16>
    %cst_52 = arith.constant dense<0.000000e+00> : vector<2x64xf32>
    %65 = tpu.matmul %54, %64, %cst_52 {dimension_numbers = #tpu.dot_dimension_numbers<[1], [0], [0], [1], [0, 0, 1, 1], [], []>} : vector<2x64xbf16>, vector<64x64xbf16>, vector<2x64xf32> -> vector<2x64xf32>
    %66 = arith.addf %36, %65 : vector<2x64xf32>
    %c0_53 = arith.constant 0 : index
    %c0_54 = arith.constant 0 : index
    %67 = vector.load %arg13[%c0_53, %c0_54] : memref<1x64xf32, #tpu.memory_space<vmem>>, vector<1x64xf32>
    %68 = vector.broadcast %67 : vector<1x64xf32> to vector<16x64xf32>
    %69 = arith.addf %57, %68 : vector<16x64xf32>
    %cst_55 = arith.constant 0.000000e+00 : f32
    %70 = vector.broadcast %cst_55 : f32 to vector<16x64xf32>
    %71 = arith.maximumf %69, %70 : vector<16x64xf32>
    %72 = arith.truncf %71 : vector<16x64xf32> to vector<16x64xbf16>
    %c0_56 = arith.constant 0 : index
    %c0_57 = arith.constant 0 : index
    %73 = vector.load %arg11[%c0_56, %c0_57] : memref<64x64xbf16, #tpu.memory_space<vmem>>, vector<64x64xbf16>
    %cst_58 = arith.constant dense<0.000000e+00> : vector<16x64xf32>
    %74 = tpu.matmul %72, %73, %cst_58 {dimension_numbers = #tpu.dot_dimension_numbers<[1], [0], [0], [1], [0, 0, 1, 1], [], []>} : vector<16x64xbf16>, vector<64x64xbf16>, vector<16x64xf32> -> vector<16x64xf32>
    %c0_59 = arith.constant 0 : index
    %c0_60 = arith.constant 0 : index
    %75 = vector.load %arg14[%c0_59, %c0_60] : memref<1x64xf32, #tpu.memory_space<vmem>>, vector<1x64xf32>
    %76 = vector.broadcast %75 : vector<1x64xf32> to vector<16x64xf32>
    %77 = arith.addf %74, %76 : vector<16x64xf32>
    %cst_61 = arith.constant 0.000000e+00 : f32
    %78 = vector.broadcast %cst_61 : f32 to vector<16x64xf32>
    %79 = arith.maximumf %77, %78 : vector<16x64xf32>
    %80 = arith.truncf %79 : vector<16x64xf32> to vector<16x64xbf16>
    %c0_62 = arith.constant 0 : index
    %c0_63 = arith.constant 0 : index
    %81 = vector.load %arg12[%c0_62, %c0_63] : memref<64x64xbf16, #tpu.memory_space<vmem>>, vector<64x64xbf16>
    %cst_64 = arith.constant dense<0.000000e+00> : vector<16x64xf32>
    %82 = tpu.matmul %80, %81, %cst_64 {dimension_numbers = #tpu.dot_dimension_numbers<[1], [0], [0], [1], [0, 0, 1, 1], [], []>} : vector<16x64xbf16>, vector<64x64xbf16>, vector<16x64xf32> -> vector<16x64xf32>
    %c0_65 = arith.constant 0 : index
    %c0_66 = arith.constant 0 : index
    %83 = vector.load %arg15[%c0_65, %c0_66] : memref<1x64xf32, #tpu.memory_space<vmem>>, vector<1x64xf32>
    %84 = vector.broadcast %83 : vector<1x64xf32> to vector<16x64xf32>
    %85 = arith.addf %82, %84 : vector<16x64xf32>
    %cst_67 = arith.constant 0.000000e+00 : f32
    %86 = vector.broadcast %cst_67 : f32 to vector<16x64xf32>
    %87 = arith.maximumf %85, %86 : vector<16x64xf32>
    %88 = arith.addf %87, %60 : vector<16x64xf32>
    %c0_68 = arith.constant 0 : index
    %c0_69 = arith.constant 0 : index
    %89 = vector.load %arg16[%c0_68, %c0_69] : memref<1x64xf32, #tpu.memory_space<vmem>>, vector<1x64xf32>
    %90 = vector.broadcast %89 : vector<1x64xf32> to vector<16x64xf32>
    %91 = arith.addf %88, %90 : vector<16x64xf32>
    %c0_70 = arith.constant 0 : index
    %c0_71 = arith.constant 0 : index
    %92 = vector.load %arg21[%c0_70, %c0_71] : memref<1x64xf32, #tpu.memory_space<vmem>>, vector<1x64xf32>
    %93 = vector.broadcast %92 : vector<1x64xf32> to vector<2x64xf32>
    %94 = arith.addf %63, %93 : vector<2x64xf32>
    %cst_72 = arith.constant 0.000000e+00 : f32
    %95 = vector.broadcast %cst_72 : f32 to vector<2x64xf32>
    %96 = arith.maximumf %94, %95 : vector<2x64xf32>
    %97 = arith.truncf %96 : vector<2x64xf32> to vector<2x64xbf16>
    %c0_73 = arith.constant 0 : index
    %c0_74 = arith.constant 0 : index
    %98 = vector.load %arg19[%c0_73, %c0_74] : memref<64x64xbf16, #tpu.memory_space<vmem>>, vector<64x64xbf16>
    %cst_75 = arith.constant dense<0.000000e+00> : vector<2x64xf32>
    %99 = tpu.matmul %97, %98, %cst_75 {dimension_numbers = #tpu.dot_dimension_numbers<[1], [0], [0], [1], [0, 0, 1, 1], [], []>} : vector<2x64xbf16>, vector<64x64xbf16>, vector<2x64xf32> -> vector<2x64xf32>
    %c0_76 = arith.constant 0 : index
    %c0_77 = arith.constant 0 : index
    %100 = vector.load %arg22[%c0_76, %c0_77] : memref<1x64xf32, #tpu.memory_space<vmem>>, vector<1x64xf32>
    %101 = vector.broadcast %100 : vector<1x64xf32> to vector<2x64xf32>
    %102 = arith.addf %99, %101 : vector<2x64xf32>
    %cst_78 = arith.constant 0.000000e+00 : f32
    %103 = vector.broadcast %cst_78 : f32 to vector<2x64xf32>
    %104 = arith.maximumf %102, %103 : vector<2x64xf32>
    %105 = arith.truncf %104 : vector<2x64xf32> to vector<2x64xbf16>
    %c0_79 = arith.constant 0 : index
    %c0_80 = arith.constant 0 : index
    %106 = vector.load %arg20[%c0_79, %c0_80] : memref<64x64xbf16, #tpu.memory_space<vmem>>, vector<64x64xbf16>
    %cst_81 = arith.constant dense<0.000000e+00> : vector<2x64xf32>
    %107 = tpu.matmul %105, %106, %cst_81 {dimension_numbers = #tpu.dot_dimension_numbers<[1], [0], [0], [1], [0, 0, 1, 1], [], []>} : vector<2x64xbf16>, vector<64x64xbf16>, vector<2x64xf32> -> vector<2x64xf32>
    %c0_82 = arith.constant 0 : index
    %c0_83 = arith.constant 0 : index
    %108 = vector.load %arg23[%c0_82, %c0_83] : memref<1x64xf32, #tpu.memory_space<vmem>>, vector<1x64xf32>
    %109 = vector.broadcast %108 : vector<1x64xf32> to vector<2x64xf32>
    %110 = arith.addf %107, %109 : vector<2x64xf32>
    %cst_84 = arith.constant 0.000000e+00 : f32
    %111 = vector.broadcast %cst_84 : f32 to vector<2x64xf32>
    %112 = arith.maximumf %110, %111 : vector<2x64xf32>
    %113 = arith.addf %112, %66 : vector<2x64xf32>
    %c0_85 = arith.constant 0 : index
    %c0_86 = arith.constant 0 : index
    %114 = vector.load %arg24[%c0_85, %c0_86] : memref<1x64xf32, #tpu.memory_space<vmem>>, vector<1x64xf32>
    %115 = vector.broadcast %114 : vector<1x64xf32> to vector<2x64xf32>
    %116 = arith.addf %113, %115 : vector<2x64xf32>
    %117 = arith.truncf %91 : vector<16x64xf32> to vector<16x64xbf16>
    %c0_87 = arith.constant 0 : index
    %c0_88 = arith.constant 0 : index
    %118 = vector.load %arg25[%c0_87, %c0_88] : memref<16x64xbf16, #tpu.memory_space<vmem>>, vector<16x64xbf16>
    tpu.vector_store %arg25[%c0_87, %c0_88], %117 {strides = array<i32>} : memref<16x64xbf16, #tpu.memory_space<vmem>>, vector<16x64xbf16>,
    %119 = arith.truncf %116 : vector<2x64xf32> to vector<2x64xbf16>
    %c0_89 = arith.constant 0 : index
    %c0_90 = arith.constant 0 : index
    %120 = vector.load %arg26[%c0_89, %c0_90] : memref<2x64xbf16, #tpu.memory_space<vmem>>, vector<2x64xbf16>
    tpu.vector_store %arg26[%c0_89, %c0_90], %119 {strides = array<i32>} : memref<2x64xbf16, #tpu.memory_space<vmem>>, vector<2x64xbf16>,
    return
  }
}

</mosaic_0001>

<llo_original>
// kernel: encoder_forward.1
$region0: #{encoder_forward.1}
  #allocation0 [shape = 'u32[]', space=smem, size = 0x4, offset = 0x4, fixed_abs, tag = 'smem constant byte address 0x4 - core index']
  #allocation1 [shape = 'u32[144,128]{1,0:T(1,128)}', space=vmem, size = 0x12000, scoped, tag = 'internal scratch']
  %s0 = inlined_call_operand.vmem [shape: bf16[16,16], index: 0, kind: input, shape index: {}]
  %s1 = inlined_call_operand.vmem [shape: bf16[16,32], index: 1, kind: input, shape index: {}]
  %s2 = inlined_call_operand.vmem [shape: f32[2,16], index: 2, kind: input, shape index: {}]
  %s3 = inlined_call_operand.vmem [shape: bf16[32,64], index: 3, kind: input, shape index: {}]
  %s4 = inlined_call_operand.vmem [shape: f32[1,64], index: 4, kind: input, shape index: {}]
  %s5 = inlined_call_operand.vmem [shape: f32[1,64], index: 5, kind: input, shape index: {}]
  %s6 = inlined_call_operand.vmem [shape: bf16[64,64], index: 6, kind: input, shape index: {}]
  %s7 = inlined_call_operand.vmem [shape: f32[1,64], index: 7, kind: input, shape index: {}]
  %s8 = inlined_call_operand.vmem [shape: f32[1,64], index: 8, kind: input, shape index: {}]
  %s9 = inlined_call_operand.vmem [shape: bf16[128,64], index: 9, kind: input, shape index: {}]
  %s10 = inlined_call_operand.vmem [shape: bf16[128,64], index: 10, kind: input, shape index: {}]
  %s11 = inlined_call_operand.vmem [shape: bf16[64,64], index: 11, kind: input, shape index: {}]
  %s12 = inlined_call_operand.vmem [shape: bf16[64,64], index: 12, kind: input, shape index: {}]
  %s13 = inlined_call_operand.vmem [shape: f32[1,64], index: 13, kind: input, shape index: {}]
  %s14 = inlined_call_operand.vmem [shape: f32[1,64], index: 14, kind: input, shape index: {}]
  %s15 = inlined_call_operand.vmem [shape: f32[1,64], index: 15, kind: input, shape index: {}]
  %s16 = inlined_call_operand.vmem [shape: f32[1,64], index: 16, kind: input, shape index: {}]
  %s17 = inlined_call_operand.vmem [shape: bf16[128,64], index: 17, kind: input, shape index: {}]
  %s18 = inlined_call_operand.vmem [shape: bf16[128,64], index: 18, kind: input, shape index: {}]
  %s19 = inlined_call_operand.vmem [shape: bf16[64,64], index: 19, kind: input, shape index: {}]
  %s20 = inlined_call_operand.vmem [shape: bf16[64,64], index: 20, kind: input, shape index: {}]
  %s21 = inlined_call_operand.vmem [shape: f32[1,64], index: 21, kind: input, shape index: {}]
  %s22 = inlined_call_operand.vmem [shape: f32[1,64], index: 22, kind: input, shape index: {}]
  %s23 = inlined_call_operand.vmem [shape: f32[1,64], index: 23, kind: input, shape index: {}]
  %s24 = inlined_call_operand.vmem [shape: f32[1,64], index: 24, kind: input, shape index: {}]
  %s25 = inlined_call_operand.vmem [shape: bf16[16,64], index: 25, kind: output, shape index: {0}]
  %s26 = inlined_call_operand.vmem [shape: bf16[2,64], index: 26, kind: output, shape index: {1}]
  %27 = xla_tuple %s25, %s26
  %s28 = sld [smem:[#allocation0]]
  $region118: #{encoder_forward.1} parent=0
    _
  %s30 = ssub.s32 1, %s28
  %s31 = scalar_select 0, %s30, %s28
  // Predicated region
  $region2: #{encoder_forward.1} parent=0 // pred_check
    _
  $region3: #{encoder_forward.1} parent=0 // pred_check_branch
    %33 = sbr.rel (0) target = $region5
  $region4: #{encoder_forward.1} parent=0 // pred_region
    _
  $region5: #{encoder_forward.1} parent=0 // pred_fallthru
    _
  // Predicated region
  $region6: #{encoder_forward.1} parent=0 // pred_check
    _
  $region7: #{encoder_forward.1} parent=0 // pred_check_branch
    %35 = sbr.rel (0) target = $region9
  $region8: #{encoder_forward.1} parent=0 // pred_region
    _
  $region9: #{encoder_forward.1} parent=0 // pred_fallthru
    _
  // Predicated region
  $region10: #{encoder_forward.1} parent=0 // pred_check
    _
  $region11: #{encoder_forward.1} parent=0 // pred_check_branch
    %37 = sbr.rel (0) target = $region13
  $region12: #{encoder_forward.1} parent=0 // pred_region
    _
  $region13: #{encoder_forward.1} parent=0 // pred_fallthru
    _
  // Predicated region
  $region14: #{encoder_forward.1} parent=0 // pred_check
    _
  $region15: #{encoder_forward.1} parent=0 // pred_check_branch
    %39 = sbr.rel (0) target = $region17
  $region16: #{encoder_forward.1} parent=0 // pred_region
    _
  $region17: #{encoder_forward.1} parent=0 // pred_fallthru
    _
  // Predicated region
  $region18: #{encoder_forward.1} parent=0 // pred_check
    _
  $region19: #{encoder_forward.1} parent=0 // pred_check_branch
    %41 = sbr.rel (0) target = $region21
  $region20: #{encoder_forward.1} parent=0 // pred_region
    _
  $region21: #{encoder_forward.1} parent=0 // pred_fallthru
    _
  // Predicated region
  $region22: #{encoder_forward.1} parent=0 // pred_check
    _
  $region23: #{encoder_forward.1} parent=0 // pred_check_branch
    %43 = sbr.rel (0) target = $region25
  $region24: #{encoder_forward.1} parent=0 // pred_region
    _
  $region25: #{encoder_forward.1} parent=0 // pred_fallthru
    _
  // Predicated region
  $region26: #{encoder_forward.1} parent=0 // pred_check
    _
  $region27: #{encoder_forward.1} parent=0 // pred_check_branch
    %45 = sbr.rel (0) target = $region29
  $region28: #{encoder_forward.1} parent=0 // pred_region
    _
  $region29: #{encoder_forward.1} parent=0 // pred_fallthru
    _
  // Predicated region
  $region30: #{encoder_forward.1} parent=0 // pred_check
    _
  $region31: #{encoder_forward.1} parent=0 // pred_check_branch
    %47 = sbr.rel (0) target = $region33
  $region32: #{encoder_forward.1} parent=0 // pred_region
    _
  $region33: #{encoder_forward.1} parent=0 // pred_fallthru
    _
  // Predicated region
  $region34: #{encoder_forward.1} parent=0 // pred_check
    _
  $region35: #{encoder_forward.1} parent=0 // pred_check_branch
    %49 = sbr.rel (0) target = $region37
  $region36: #{encoder_forward.1} parent=0 // pred_region
    _
  $region37: #{encoder_forward.1} parent=0 // pred_fallthru
    _
  // Predicated region
  $region38: #{encoder_forward.1} parent=0 // pred_check
    _
  $region39: #{encoder_forward.1} parent=0 // pred_check_branch
    %51 = sbr.rel (0) target = $region41
  $region40: #{encoder_forward.1} parent=0 // pred_region
    _
  $region41: #{encoder_forward.1} parent=0 // pred_fallthru
    _
  // Predicated region
  $region42: #{encoder_forward.1} parent=0 // pred_check
    _
  $region43: #{encoder_forward.1} parent=0 // pred_check_branch
    %53 = sbr.rel (0) target = $region45
  $region44: #{encoder_forward.1} parent=0 // pred_region
    _
  $region45: #{encoder_forward.1} parent=0 // pred_fallthru
    _
  // Predicated region
  $region46: #{encoder_forward.1} parent=0 // pred_check
    _
  $region47: #{encoder_forward.1} parent=0 // pred_check_branch
    %55 = sbr.rel (0) target = $region49
  $region48: #{encoder_forward.1} parent=0 // pred_region
    _
  $region49: #{encoder_forward.1} parent=0 // pred_fallthru
    _
  // Predicated region
  $region50: #{encoder_forward.1} parent=0 // pred_check
    _
  $region51: #{encoder_forward.1} parent=0 // pred_check_branch
    %57 = sbr.rel (0) target = $region53
  $region52: #{encoder_forward.1} parent=0 // pred_region
    _
  $region53: #{encoder_forward.1} parent=0 // pred_fallthru
    _
  // Predicated region
  $region54: #{encoder_forward.1} parent=0 // pred_check
    _
  $region55: #{encoder_forward.1} parent=0 // pred_check_branch
    %59 = sbr.rel (0) target = $region57
  $region56: #{encoder_forward.1} parent=0 // pred_region
    _
  $region57: #{encoder_forward.1} parent=0 // pred_fallthru
    _
  // Predicated region
  $region58: #{encoder_forward.1} parent=0 // pred_check
    _
  $region59: #{encoder_forward.1} parent=0 // pred_check_branch
    %61 = sbr.rel (0) target = $region61
  $region60: #{encoder_forward.1} parent=0 // pred_region
    _
  $region61: #{encoder_forward.1} parent=0 // pred_fallthru
    _
  // Predicated region
  $region62: #{encoder_forward.1} parent=0 // pred_check
    _
  $region63: #{encoder_forward.1} parent=0 // pred_check_branch
    %63 = sbr.rel (0) target = $region65
  $region64: #{encoder_forward.1} parent=0 // pred_region
    _
  $region65: #{encoder_forward.1} parent=0 // pred_fallthru
    _
  // Predicated region
  $region66: #{encoder_forward.1} parent=0 // pred_check
    _
  $region67: #{encoder_forward.1} parent=0 // pred_check_branch
    %65 = sbr.rel (0) target = $region69
  $region68: #{encoder_forward.1} parent=0 // pred_region
    _
  $region69: #{encoder_forward.1} parent=0 // pred_fallthru
    _
  // Predicated region
  $region70: #{encoder_forward.1} parent=0 // pred_check
    _
  $region71: #{encoder_forward.1} parent=0 // pred_check_branch
    %67 = sbr.rel (0) target = $region73
  $region72: #{encoder_forward.1} parent=0 // pred_region
    _
  $region73: #{encoder_forward.1} parent=0 // pred_fallthru
    _
  // Predicated region
  $region74: #{encoder_forward.1} parent=0 // pred_check
    _
  $region75: #{encoder_forward.1} parent=0 // pred_check_branch
    %69 = sbr.rel (0) target = $region77
  $region76: #{encoder_forward.1} parent=0 // pred_region
    _
  $region77: #{encoder_forward.1} parent=0 // pred_fallthru
    _
  // Predicated region
  $region78: #{encoder_forward.1} parent=0 // pred_check
    _
  $region79: #{encoder_forward.1} parent=0 // pred_check_branch
    %71 = sbr.rel (0) target = $region81
  $region80: #{encoder_forward.1} parent=0 // pred_region
    _
  $region81: #{encoder_forward.1} parent=0 // pred_fallthru
    _
  // Predicated region
  $region82: #{encoder_forward.1} parent=0 // pred_check
    _
  $region83: #{encoder_forward.1} parent=0 // pred_check_branch
    %73 = sbr.rel (0) target = $region85
  $region84: #{encoder_forward.1} parent=0 // pred_region
    _
  $region85: #{encoder_forward.1} parent=0 // pred_fallthru
    _
  // Predicated region
  $region86: #{encoder_forward.1} parent=0 // pred_check
    _
  $region87: #{encoder_forward.1} parent=0 // pred_check_branch
    %75 = sbr.rel (0) target = $region89
  $region88: #{encoder_forward.1} parent=0 // pred_region
    _
  $region89: #{encoder_forward.1} parent=0 // pred_fallthru
    _
  // Predicated region
  $region90: #{encoder_forward.1} parent=0 // pred_check
    _
  $region91: #{encoder_forward.1} parent=0 // pred_check_branch
    %77 = sbr.rel (0) target = $region93
  $region92: #{encoder_forward.1} parent=0 // pred_region
    _
  $region93: #{encoder_forward.1} parent=0 // pred_fallthru
    _
  // Predicated region
  $region94: #{encoder_forward.1} parent=0 // pred_check
    _
  $region95: #{encoder_forward.1} parent=0 // pred_check_branch
    %79 = sbr.rel (0) target = $region97
  $region96: #{encoder_forward.1} parent=0 // pred_region
    _
  $region97: #{encoder_forward.1} parent=0 // pred_fallthru
    _
  // Predicated region
  $region98: #{encoder_forward.1} parent=0 // pred_check
    _
  $region99: #{encoder_forward.1} parent=0 // pred_check_branch
    %81 = sbr.rel (0) target = $region101
  $region100: #{encoder_forward.1} parent=0 // pred_region
    _
  $region101: #{encoder_forward.1} parent=0 // pred_fallthru
    _
  %v83 = vld [vmem:[%s0] sm:$0xf]
  %v84 = vld [vmem:[%s0 + $0x4] sm:$0xf]
  %v85 = vld [vmem:[%s2] sm:$0x3]
  %v86 = vld [vmem:[%s1] sm:$0xf]
  %v87 = vld [vmem:[%s1 + $0x4] sm:$0xf]
  %v88 = vld [vmem:[%s3] sm:$0xf]
  %v89 = vld [vmem:[%s3 + $0x4] sm:$0xf]
  %v90 = vld [vmem:[%s3 + $0x8] sm:$0xf]
  %v91 = vld [vmem:[%s3 + $0xc] sm:$0xf]
  %v92 = vld [vmem:[%s4] sm:$0x1]
  %v93 = vld [vmem:[%s5] sm:$0x1]
  %v96 = vunpack.c.l.b16 %v86
  %v97 = vunpack.c.l.b16 %v87
  %v98 = vpack.c.b16 %v97, %v96
  %v103 = vunpack.c.l.b16 %v88
  %v104 = vunpack.c.l.b16 %v89
  %v105 = vunpack.c.l.b16 %v90
  %v106 = vunpack.c.l.b16 %v91
  %v107 = vpack.c.b16 %v104, %v103
  %v108 = vpack.c.b16 %v106, %v105
  %vm111 = vcmask 261120
  %v113 = vsel %vm111, %v98, 0
  %115 = vmatprep.subr.bf16.mxu0 0
  %116 = vmatpush1.bf16.msra.mxu0 0
  %117 = vmatprep.subr.bf16.mxu0 0
  %118 = vmatpush1.bf16.msra.mxu0 0
  %119 = vmatprep.subr.bf16.mxu0 0
  %120 = vmatpush1.bf16.msra.mxu0 0
  %121 = vmatprep.subr.bf16.mxu0 0
  %122 = vmatpush1.bf16.msra.mxu0 0
  %123 = vmatprep.subr.bf16.mxu0 0
  %124 = vmatpush1.bf16.msra.mxu0 0
  %125 = vmatprep.subr.bf16.mxu0 0
  %126 = vmatpush1.bf16.msra.mxu0 0
  %127 = vmatprep.subr.bf16.mxu0 0
  %128 = vmatpush1.bf16.msra.mxu0 %v108
  %129 = vmatprep.subr.bf16.mxu0 0
  %130 = vmatpush1.bf16.msra.mxu0 %v107
  %131 = vmatprep.subr.bf16.mxu0 0
  %132 = vmatpush2.bf16.msra.mxu0 0
  %133 = vmatprep.subr.bf16.mxu0 0
  %134 = vmatpush2.bf16.msra.mxu0 0
  %135 = vmatprep.subr.bf16.mxu0 0
  %136 = vmatpush2.bf16.msra.mxu0 0
  %137 = vmatprep.subr.bf16.mxu0 0
  %138 = vmatpush2.bf16.msra.mxu0 0
  %139 = vmatprep.subr.bf16.mxu0 0
  %140 = vmatpush2.bf16.msra.mxu0 0
  %141 = vmatprep.subr.bf16.mxu0 0
  %142 = vmatpush2.bf16.msra.mxu0 0
  %143 = vmatprep.subr.bf16.mxu0 0
  %144 = vmatpush2.bf16.msra.mxu0 0
  %145 = vmatprep.subr.bf16.mxu0 0
  %146 = vmatpush2.bf16.msra.mxu0 0
  %147 = vmatprep.mubr.bf16.mxu0 0
  %148 = vmatmul.mubr.bf16.gmra.mxu0 %v113
  %v149 = vpop.f32.mrf.mxu0
  %v150 = vadd.f32 0.0, %v149
  %v151 = vpop.f32.mrf.mxu0
  %v152 = vpop.f32.mrf.mxu0
  %v153 = vadd.f32 0.0, %v152
  %v154 = vpop.f32.mrf.mxu0
  %155 = vdwg.mxu0
  %v156 = vpack.c.bf16 %v153, %v150
  %v158 = vlaneseq
  %v159 = vshrl.u32 %v158, 7
  %v160 = vsub.s32 0, %v159
  %v161 = vrot.slane %v92, %v160
  %v165 = vunpack.c.l.b16 %v83
  %v166 = vunpack.c.l.b16 %v84
  %v167 = vpack.c.b16 %v166, %v165
  %vm168 = vcmask 130048
  %v170 = vsel %vm168, %v167, 0
  %172 = vmatprep.subr.bf16.mxu0 0
  %173 = vmatpush1.bf16.msra.mxu0 0
  %174 = vmatprep.subr.bf16.mxu0 0
  %175 = vmatpush1.bf16.msra.mxu0 0
  %176 = vmatprep.subr.bf16.mxu0 0
  %177 = vmatpush1.bf16.msra.mxu0 0
  %178 = vmatprep.subr.bf16.mxu0 0
  %179 = vmatpush1.bf16.msra.mxu0 0
  %180 = vmatprep.subr.bf16.mxu0 0
  %181 = vmatpush1.bf16.msra.mxu0 0
  %182 = vmatprep.subr.bf16.mxu0 0
  %183 = vmatpush1.bf16.msra.mxu0 0
  %184 = vmatprep.subr.bf16.mxu0 0
  %185 = vmatpush1.bf16.msra.mxu0 0
  %186 = vmatprep.subr.bf16.mxu0 0
  %187 = vmatpush1.bf16.msra.mxu0 %v156
  %188 = vmatprep.subr.bf16.mxu0 0
  %189 = vmatpush2.bf16.msra.mxu0 0
  %190 = vmatprep.subr.bf16.mxu0 0
  %191 = vmatpush2.bf16.msra.mxu0 0
  %192 = vmatprep.subr.bf16.mxu0 0
  %193 = vmatpush2.bf16.msra.mxu0 0
  %194 = vmatprep.subr.bf16.mxu0 0
  %195 = vmatpush2.bf16.msra.mxu0 0
  %196 = vmatprep.subr.bf16.mxu0 0
  %197 = vmatpush2.bf16.msra.mxu0 0
  %198 = vmatprep.subr.bf16.mxu0 0
  %199 = vmatpush2.bf16.msra.mxu0 0
  %200 = vmatprep.subr.bf16.mxu0 0
  %201 = vmatpush2.bf16.msra.mxu0 0
  %202 = vmatprep.subr.bf16.mxu0 0
  %203 = vmatpush2.bf16.msra.mxu0 0
  %204 = vmatprep.mubr.bf16.mxu0 0
  %205 = vmatmul.mubr.bf16.gmra.mxu0 %v170
  %v206 = vpop.f32.mrf.mxu0
  %v207 = vadd.f32 %v161, %v206
  %v208 = vpop.f32.mrf.mxu0
  %v209 = vpop.f32.mrf.mxu0
  %v210 = vadd.f32 %v161, %v209
  %v211 = vpop.f32.mrf.mxu0
  %212 = vdwg.mxu0
  %v213 = vmax.f32 %v207, 0.0
  %v214 = vmax.f32 %v210, 0.0
  %v215 = vmin.f32 %v207, 0.0
  %v216 = vmin.f32 %v210, 0.0
  %v218 = vlaneseq
  %v219 = vshrl.u32 %v218, 7
  %v220 = vsub.s32 0, %v219
  %v221 = vrot.slane %v93, %v220
  %v223 = vmul.f32 %v221, %v215
  %v224 = vmul.f32 %v221, %v216
  %v225 = vadd.f32 %v213, %v223
  %v226 = vadd.f32 %v214, %v224
  %v227 = vpack.c.bf16 %v226, %v225
  %v229 = vsel %vm168, %v85, 0
  %231 = vmatprep.subr.mxu0 0.0
  %232 = vmatpush1.msra.mxu0 0.0
  %233 = vmatprep.subr.mxu0 0.0
  %234 = vmatpush1.msra.mxu0 0.0
  %235 = vmatprep.subr.mxu0 0.0
  %236 = vmatpush1.msra.mxu0 0.0
  %237 = vmatprep.subr.mxu0 0.0
  %238 = vmatpush1.msra.mxu0 0.0
  %239 = vmatprep.subr.mxu0 0.0
  %240 = vmatpush1.msra.mxu0 0.0
  %241 = vmatprep.subr.mxu0 0.0
  %242 = vmatpush1.msra.mxu0 0.0
  %243 = vmatprep.subr.mxu0 0.0
  %244 = vmatpush1.msra.mxu0 0.0
  %245 = vmatprep.subr.mxu0 0.0
  %246 = vmatpush1.msra.mxu0 0.0
  %247 = vmatprep.subr.mxu0 0.0
  %248 = vmatpush1.msra.mxu0 0.0
  %249 = vmatprep.subr.mxu0 0.0
  %250 = vmatpush1.msra.mxu0 0.0
  %251 = vmatprep.subr.mxu0 0.0
  %252 = vmatpush1.msra.mxu0 0.0
  %253 = vmatprep.subr.mxu0 0.0
  %254 = vmatpush1.msra.mxu0 0.0
  %255 = vmatprep.subr.mxu0 0.0
  %256 = vmatpush1.msra.mxu0 0.0
  %257 = vmatprep.subr.mxu0 0.0
  %258 = vmatpush1.msra.mxu0 0.0
  %259 = vmatprep.subr.mxu0 0.0
  %260 = vmatpush1.msra.mxu0 %v226
  %261 = vmatprep.subr.mxu0 0.0
  %262 = vmatpush1.msra.mxu0 %v225
  %263 = vmatprep.subr.mxu0 0.0
  %264 = vmatpush2.msra.mxu0 0.0
  %265 = vmatprep.subr.mxu0 0.0
  %266 = vmatpush2.msra.mxu0 0.0
  %267 = vmatprep.subr.mxu0 0.0
  %268 = vmatpush2.msra.mxu0 0.0
  %269 = vmatprep.subr.mxu0 0.0
  %270 = vmatpush2.msra.mxu0 0.0
  %271 = vmatprep.subr.mxu0 0.0
  %272 = vmatpush2.msra.mxu0 0.0
  %273 = vmatprep.subr.mxu0 0.0
  %274 = vmatpush2.msra.mxu0 0.0
  %275 = vmatprep.subr.mxu0 0.0
  %276 = vmatpush2.msra.mxu0 0.0
  %277 = vmatprep.subr.mxu0 0.0
  %278 = vmatpush2.msra.mxu0 0.0
  %279 = vmatprep.subr.mxu0 0.0
  %280 = vmatpush2.msra.mxu0 0.0
  %281 = vmatprep.subr.mxu0 0.0
  %282 = vmatpush2.msra.mxu0 0.0
  %283 = vmatprep.subr.mxu0 0.0
  %284 = vmatpush2.msra.mxu0 0.0
  %285 = vmatprep.subr.mxu0 0.0
  %286 = vmatpush2.msra.mxu0 0.0
  %287 = vmatprep.subr.mxu0 0.0
  %288 = vmatpush2.msra.mxu0 0.0
  %289 = vmatprep.subr.mxu0 0.0
  %290 = vmatpush2.msra.mxu0 0.0
  %291 = vmatprep.subr.mxu0 0.0
  %292 = vmatpush2.msra.mxu0 0.0
  %293 = vmatprep.subr.mxu0 0.0
  %294 = vmatpush2.msra.mxu0 0.0
  %295 = vmatprep.mubr.f32.mxu0 0.0
  %296 = vmatmul.mubr.f32.gmra.mxu0 %v229
  %v297 = vpop.f32.mrf.mxu0
  %v298 = vadd.f32 0.0, %v297
  %v299 = vpop.f32.mrf.mxu0
  %300 = vdwg.mxu0
  %v301 = vpack.c.bf16 %v298, %v298
  %v302 = vld [vmem:[%s9] sm:$0xf]
  %v303 = vld [vmem:[%s9 + $0x4] sm:$0xf]
  %v304 = vld [vmem:[%s9 + $0x8] sm:$0xf]
  %v305 = vld [vmem:[%s9 + $0xc] sm:$0xf]
  %v306 = vld [vmem:[%s9 + $0x10] sm:$0xf]
  %v307 = vld [vmem:[%s9 + $0x14] sm:$0xf]
  %v308 = vld [vmem:[%s9 + $0x18] sm:$0xf]
  %v309 = vld [vmem:[%s9 + $0x1c] sm:$0xf]
  %v310 = vld [vmem:[%s10] sm:$0xf]
  %v311 = vld [vmem:[%s10 + $0x4] sm:$0xf]
  %v312 = vld [vmem:[%s10 + $0x8] sm:$0xf]
  %v313 = vld [vmem:[%s10 + $0xc] sm:$0xf]
  %v314 = vld [vmem:[%s10 + $0x10] sm:$0xf]
  %v315 = vld [vmem:[%s10 + $0x14] sm:$0xf]
  %v316 = vld [vmem:[%s10 + $0x18] sm:$0xf]
  %v317 = vld [vmem:[%s10 + $0x1c] sm:$0xf]
  %v318 = vld [vmem:[%s17] sm:$0xf]
  %v319 = vld [vmem:[%s17 + $0x4] sm:$0xf]
  %v320 = vld [vmem:[%s17 + $0x8] sm:$0xf]
  %v321 = vld [vmem:[%s17 + $0xc] sm:$0xf]
  %v322 = vld [vmem:[%s17 + $0x10] sm:$0xf]
  %v323 = vld [vmem:[%s17 + $0x14] sm:$0xf]
  %v324 = vld [vmem:[%s17 + $0x18] sm:$0xf]
  %v325 = vld [vmem:[%s17 + $0x1c] sm:$0xf]
  %v326 = vld [vmem:[%s18] sm:$0xf]
  %v327 = vld [vmem:[%s18 + $0x4] sm:$0xf]
  %v328 = vld [vmem:[%s18 + $0x8] sm:$0xf]
  %v329 = vld [vmem:[%s18 + $0xc] sm:$0xf]
  %v330 = vld [vmem:[%s18 + $0x10] sm:$0xf]
  %v331 = vld [vmem:[%s18 + $0x14] sm:$0xf]
  %v332 = vld [vmem:[%s18 + $0x18] sm:$0xf]
  %v333 = vld [vmem:[%s18 + $0x1c] sm:$0xf]
  %v334 = vld [vmem:[%s6] sm:$0xf]
  %v335 = vld [vmem:[%s6 + $0x4] sm:$0xf]
  %v336 = vld [vmem:[%s6 + $0x8] sm:$0xf]
  %v337 = vld [vmem:[%s6 + $0xc] sm:$0xf]
  %v338 = vld [vmem:[%s6 + $0x10] sm:$0xf]
  %v339 = vld [vmem:[%s6 + $0x14] sm:$0xf]
  %v340 = vld [vmem:[%s6 + $0x18] sm:$0xf]
  %v341 = vld [vmem:[%s6 + $0x1c] sm:$0xf]
  %v342 = vld [vmem:[%s7] sm:$0x1]
  %v343 = vld [vmem:[%s8] sm:$0x1]
  %v352 = vunpack.c.l.b16 %v334
  %v353 = vunpack.c.l.b16 %v335
  %v354 = vunpack.c.l.b16 %v336
  %v355 = vunpack.c.l.b16 %v337
  %v356 = vunpack.c.l.b16 %v338
  %v357 = vunpack.c.l.b16 %v339
  %v358 = vunpack.c.l.b16 %v340
  %v359 = vunpack.c.l.b16 %v341
  %v360 = vpack.c.b16 %v353, %v352
  %v361 = vpack.c.b16 %v355, %v354
  %v362 = vpack.c.b16 %v357, %v356
  %v363 = vpack.c.b16 %v359, %v358
  %vm368 = vcmask 523264
  %v370 = vsel %vm368, %v227, 0
  %372 = vmatprep.subr.bf16.mxu0 0
  %373 = vmatpush1.bf16.msra.mxu0 0
  %374 = vmatprep.subr.bf16.mxu0 0
  %375 = vmatpush1.bf16.msra.mxu0 0
  %376 = vmatprep.subr.bf16.mxu0 0
  %377 = vmatpush1.bf16.msra.mxu0 0
  %378 = vmatprep.subr.bf16.mxu0 0
  %379 = vmatpush1.bf16.msra.mxu0 0
  %380 = vmatprep.subr.bf16.mxu0 0
  %381 = vmatpush1.bf16.msra.mxu0 %v363
  %382 = vmatprep.subr.bf16.mxu0 0
  %383 = vmatpush1.bf16.msra.mxu0 %v362
  %384 = vmatprep.subr.bf16.mxu0 0
  %385 = vmatpush1.bf16.msra.mxu0 %v361
  %386 = vmatprep.subr.bf16.mxu0 0
  %387 = vmatpush1.bf16.msra.mxu0 %v360
  %388 = vmatprep.subr.bf16.mxu0 0
  %389 = vmatpush2.bf16.msra.mxu0 0
  %390 = vmatprep.subr.bf16.mxu0 0
  %391 = vmatpush2.bf16.msra.mxu0 0
  %392 = vmatprep.subr.bf16.mxu0 0
  %393 = vmatpush2.bf16.msra.mxu0 0
  %394 = vmatprep.subr.bf16.mxu0 0
  %395 = vmatpush2.bf16.msra.mxu0 0
  %396 = vmatprep.subr.bf16.mxu0 0
  %397 = vmatpush2.bf16.msra.mxu0 0
  %398 = vmatprep.subr.bf16.mxu0 0
  %399 = vmatpush2.bf16.msra.mxu0 0
  %400 = vmatprep.subr.bf16.mxu0 0
  %401 = vmatpush2.bf16.msra.mxu0 0
  %402 = vmatprep.subr.bf16.mxu0 0
  %403 = vmatpush2.bf16.msra.mxu0 0
  %404 = vmatprep.mubr.bf16.mxu0 0
  %405 = vmatmul.mubr.bf16.gmra.mxu0 %v370
  %v406 = vpop.f32.mrf.mxu0
  %v407 = vadd.f32 0.0, %v406
  %v408 = vpop.f32.mrf.mxu0
  %v409 = vpop.f32.mrf.mxu0
  %v410 = vadd.f32 0.0, %v409
  %v411 = vpop.f32.mrf.mxu0
  %412 = vdwg.mxu0
  %v413 = vpack.c.bf16 %v410, %v407
  %v415 = vlaneseq
  %v416 = vshrl.u32 %v415, 7
  %v417 = vsub.s32 0, %v416
  %v418 = vrot.slane %v342, %v417
  %420 = vmatprep.subr.bf16.mxu0 0
  %421 = vmatpush1.bf16.msra.mxu0 0
  %422 = vmatprep.subr.bf16.mxu0 0
  %423 = vmatpush1.bf16.msra.mxu0 0
  %424 = vmatprep.subr.bf16.mxu0 0
  %425 = vmatpush1.bf16.msra.mxu0 0
  %426 = vmatprep.subr.bf16.mxu0 0
  %427 = vmatpush1.bf16.msra.mxu0 0
  %428 = vmatprep.subr.bf16.mxu0 0
  %429 = vmatpush1.bf16.msra.mxu0 0
  %430 = vmatprep.subr.bf16.mxu0 0
  %431 = vmatpush1.bf16.msra.mxu0 0
  %432 = vmatprep.subr.bf16.mxu0 0
  %433 = vmatpush1.bf16.msra.mxu0 0
  %434 = vmatprep.subr.bf16.mxu0 0
  %435 = vmatpush1.bf16.msra.mxu0 %v413
  %436 = vmatprep.subr.bf16.mxu0 0
  %437 = vmatpush2.bf16.msra.mxu0 0
  %438 = vmatprep.subr.bf16.mxu0 0
  %439 = vmatpush2.bf16.msra.mxu0 0
  %440 = vmatprep.subr.bf16.mxu0 0
  %441 = vmatpush2.bf16.msra.mxu0 0
  %442 = vmatprep.subr.bf16.mxu0 0
  %443 = vmatpush2.bf16.msra.mxu0 0
  %444 = vmatprep.subr.bf16.mxu0 0
  %445 = vmatpush2.bf16.msra.mxu0 0
  %446 = vmatprep.subr.bf16.mxu0 0
  %447 = vmatpush2.bf16.msra.mxu0 0
  %448 = vmatprep.subr.bf16.mxu0 0
  %449 = vmatpush2.bf16.msra.mxu0 0
  %450 = vmatprep.subr.bf16.mxu0 0
  %451 = vmatpush2.bf16.msra.mxu0 0
  %452 = vmatprep.mubr.bf16.mxu0 0
  %453 = vmatmul.mubr.bf16.gmra.mxu0 %v170
  %v454 = vpop.f32.mrf.mxu0
  %v455 = vadd.f32 %v418, %v454
  %v456 = vpop.f32.mrf.mxu0
  %v457 = vpop.f32.mrf.mxu0
  %v458 = vadd.f32 %v418, %v457
  %v459 = vpop.f32.mrf.mxu0
  %460 = vdwg.mxu0
  %v461 = vmax.f32 %v455, 0.0
  %v462 = vmax.f32 %v458, 0.0
  %v463 = vmin.f32 %v455, 0.0
  %v464 = vmin.f32 %v458, 0.0
  %v466 = vlaneseq
  %v467 = vshrl.u32 %v466, 7
  %v468 = vsub.s32 0, %v467
  %v469 = vrot.slane %v343, %v468
  %v471 = vmul.f32 %v469, %v463
  %v472 = vmul.f32 %v469, %v464
  %v473 = vadd.f32 %v461, %v471
  %v474 = vadd.f32 %v462, %v472
  %v475 = vpack.c.bf16 %v474, %v473
  %476 = vmatprep.subr.mxu0 0.0
  %477 = vmatpush1.msra.mxu0 0.0
  %478 = vmatprep.subr.mxu0 0.0
  %479 = vmatpush1.msra.mxu0 0.0
  %480 = vmatprep.subr.mxu0 0.0
  %481 = vmatpush1.msra.mxu0 0.0
  %482 = vmatprep.subr.mxu0 0.0
  %483 = vmatpush1.msra.mxu0 0.0
  %484 = vmatprep.subr.mxu0 0.0
  %485 = vmatpush1.msra.mxu0 0.0
  %486 = vmatprep.subr.mxu0 0.0
  %487 = vmatpush1.msra.mxu0 0.0
  %488 = vmatprep.subr.mxu0 0.0
  %489 = vmatpush1.msra.mxu0 0.0
  %490 = vmatprep.subr.mxu0 0.0
  %491 = vmatpush1.msra.mxu0 0.0
  %492 = vmatprep.subr.mxu0 0.0
  %493 = vmatpush1.msra.mxu0 0.0
  %494 = vmatprep.subr.mxu0 0.0
  %495 = vmatpush1.msra.mxu0 0.0
  %496 = vmatprep.subr.mxu0 0.0
  %497 = vmatpush1.msra.mxu0 0.0
  %498 = vmatprep.subr.mxu0 0.0
  %499 = vmatpush1.msra.mxu0 0.0
  %500 = vmatprep.subr.mxu0 0.0
  %501 = vmatpush1.msra.mxu0 0.0
  %502 = vmatprep.subr.mxu0 0.0
  %503 = vmatpush1.msra.mxu0 0.0
  %504 = vmatprep.subr.mxu0 0.0
  %505 = vmatpush1.msra.mxu0 %v474
  %506 = vmatprep.subr.mxu0 0.0
  %507 = vmatpush1.msra.mxu0 %v473
  %508 = vmatprep.subr.mxu0 0.0
  %509 = vmatpush2.msra.mxu0 0.0
  %510 = vmatprep.subr.mxu0 0.0
  %511 = vmatpush2.msra.mxu0 0.0
  %512 = vmatprep.subr.mxu0 0.0
  %513 = vmatpush2.msra.mxu0 0.0
  %514 = vmatprep.subr.mxu0 0.0
  %515 = vmatpush2.msra.mxu0 0.0
  %516 = vmatprep.subr.mxu0 0.0
  %517 = vmatpush2.msra.mxu0 0.0
  %518 = vmatprep.subr.mxu0 0.0
  %519 = vmatpush2.msra.mxu0 0.0
  %520 = vmatprep.subr.mxu0 0.0
  %521 = vmatpush2.msra.mxu0 0.0
  %522 = vmatprep.subr.mxu0 0.0
  %523 = vmatpush2.msra.mxu0 0.0
  %524 = vmatprep.subr.mxu0 0.0
  %525 = vmatpush2.msra.mxu0 0.0
  %526 = vmatprep.subr.mxu0 0.0
  %527 = vmatpush2.msra.mxu0 0.0
  %528 = vmatprep.subr.mxu0 0.0
  %529 = vmatpush2.msra.mxu0 0.0
  %530 = vmatprep.subr.mxu0 0.0
  %531 = vmatpush2.msra.mxu0 0.0
  %532 = vmatprep.subr.mxu0 0.0
  %533 = vmatpush2.msra.mxu0 0.0
  %534 = vmatprep.subr.mxu0 0.0
  %535 = vmatpush2.msra.mxu0 0.0
  %536 = vmatprep.subr.mxu0 0.0
  %537 = vmatpush2.msra.mxu0 0.0
  %538 = vmatprep.subr.mxu0 0.0
  %539 = vmatpush2.msra.mxu0 0.0
  %540 = vmatprep.mubr.f32.mxu0 0.0
  %541 = vmatmul.mubr.f32.gmra.mxu0 %v229
  %v542 = vpop.f32.mrf.mxu0
  %v543 = vadd.f32 0.0, %v542
  %v544 = vpop.f32.mrf.mxu0
  %545 = vdwg.mxu0
  %v546 = vpack.c.bf16 %v543, %v543
  %v547 = vld [vmem:[%s9 + $0x20] sm:$0xf]
  %v548 = vld [vmem:[%s9 + $0x24] sm:$0xf]
  %v549 = vld [vmem:[%s9 + $0x28] sm:$0xf]
  %v550 = vld [vmem:[%s9 + $0x2c] sm:$0xf]
  %v551 = vld [vmem:[%s9 + $0x30] sm:$0xf]
  %v552 = vld [vmem:[%s9 + $0x34] sm:$0xf]
  %v553 = vld [vmem:[%s9 + $0x38] sm:$0xf]
  %v554 = vld [vmem:[%s9 + $0x3c] sm:$0xf]
  %v563 = vunpack.c.l.b16 %v547
  %v564 = vunpack.c.l.b16 %v548
  %v565 = vunpack.c.l.b16 %v549
  %v566 = vunpack.c.l.b16 %v550
  %v567 = vunpack.c.l.b16 %v551
  %v568 = vunpack.c.l.b16 %v552
  %v569 = vunpack.c.l.b16 %v553
  %v570 = vunpack.c.l.b16 %v554
  %v571 = vpack.c.b16 %v564, %v563
  %v572 = vpack.c.b16 %v566, %v565
  %v573 = vpack.c.b16 %v568, %v567
  %v574 = vpack.c.b16 %v570, %v569
  %v580 = vsel %vm368, %v475, 0
  %582 = vmatprep.subr.bf16.mxu0 0
  %583 = vmatpush1.bf16.msra.mxu0 0
  %584 = vmatprep.subr.bf16.mxu0 0
  %585 = vmatpush1.bf16.msra.mxu0 0
  %586 = vmatprep.subr.bf16.mxu0 0
  %587 = vmatpush1.bf16.msra.mxu0 0
  %588 = vmatprep.subr.bf16.mxu0 0
  %589 = vmatpush1.bf16.msra.mxu0 0
  %590 = vmatprep.subr.bf16.mxu0 0
  %591 = vmatpush1.bf16.msra.mxu0 %v574
  %592 = vmatprep.subr.bf16.mxu0 0
  %593 = vmatpush1.bf16.msra.mxu0 %v573
  %594 = vmatprep.subr.bf16.mxu0 0
  %595 = vmatpush1.bf16.msra.mxu0 %v572
  %596 = vmatprep.subr.bf16.mxu0 0
  %597 = vmatpush1.bf16.msra.mxu0 %v571
  %598 = vmatprep.subr.bf16.mxu0 0
  %599 = vmatpush2.bf16.msra.mxu0 0
  %600 = vmatprep.subr.bf16.mxu0 0
  %601 = vmatpush2.bf16.msra.mxu0 0
  %602 = vmatprep.subr.bf16.mxu0 0
  %603 = vmatpush2.bf16.msra.mxu0 0
  %604 = vmatprep.subr.bf16.mxu0 0
  %605 = vmatpush2.bf16.msra.mxu0 0
  %606 = vmatprep.subr.bf16.mxu0 0
  %607 = vmatpush2.bf16.msra.mxu0 0
  %608 = vmatprep.subr.bf16.mxu0 0
  %609 = vmatpush2.bf16.msra.mxu0 0
  %610 = vmatprep.subr.bf16.mxu0 0
  %611 = vmatpush2.bf16.msra.mxu0 0
  %612 = vmatprep.subr.bf16.mxu0 0
  %613 = vmatpush2.bf16.msra.mxu0 0
  %614 = vmatprep.mubr.bf16.mxu0 0
  %615 = vmatmul.mubr.bf16.gmra.mxu0 %v580
  %v616 = vpop.f32.mrf.mxu0
  %v617 = vadd.f32 0.0, %v616
  %v618 = vpop.f32.mrf.mxu0
  %v619 = vpop.f32.mrf.mxu0
  %v620 = vadd.f32 0.0, %v619
  %v621 = vpop.f32.mrf.mxu0
  %622 = vdwg.mxu0
  %v631 = vunpack.c.l.b16 %v302
  %v632 = vunpack.c.l.b16 %v303
  %v633 = vunpack.c.l.b16 %v304
  %v634 = vunpack.c.l.b16 %v305
  %v635 = vunpack.c.l.b16 %v306
  %v636 = vunpack.c.l.b16 %v307
  %v637 = vunpack.c.l.b16 %v308
  %v638 = vunpack.c.l.b16 %v309
  %v639 = vpack.c.b16 %v632, %v631
  %v640 = vpack.c.b16 %v634, %v633
  %v641 = vpack.c.b16 %v636, %v635
  %v642 = vpack.c.b16 %v638, %v637
  %647 = vmatprep.subr.bf16.mxu0 0
  %648 = vmatpush1.bf16.msra.mxu0 0
  %649 = vmatprep.subr.bf16.mxu0 0
  %650 = vmatpush1.bf16.msra.mxu0 0
  %651 = vmatprep.subr.bf16.mxu0 0
  %652 = vmatpush1.bf16.msra.mxu0 0
  %653 = vmatprep.subr.bf16.mxu0 0
  %654 = vmatpush1.bf16.msra.mxu0 0
  %655 = vmatprep.subr.bf16.mxu0 0
  %656 = vmatpush1.bf16.msra.mxu0 %v642
  %657 = vmatprep.subr.bf16.mxu0 0
  %658 = vmatpush1.bf16.msra.mxu0 %v641
  %659 = vmatprep.subr.bf16.mxu0 0
  %660 = vmatpush1.bf16.msra.mxu0 %v640
  %661 = vmatprep.subr.bf16.mxu0 0
  %662 = vmatpush1.bf16.msra.mxu0 %v639
  %663 = vmatprep.subr.bf16.mxu0 0
  %664 = vmatpush2.bf16.msra.mxu0 0
  %665 = vmatprep.subr.bf16.mxu0 0
  %666 = vmatpush2.bf16.msra.mxu0 0
  %667 = vmatprep.subr.bf16.mxu0 0
  %668 = vmatpush2.bf16.msra.mxu0 0
  %669 = vmatprep.subr.bf16.mxu0 0
  %670 = vmatpush2.bf16.msra.mxu0 0
  %671 = vmatprep.subr.bf16.mxu0 0
  %672 = vmatpush2.bf16.msra.mxu0 0
  %673 = vmatprep.subr.bf16.mxu0 0
  %674 = vmatpush2.bf16.msra.mxu0 0
  %675 = vmatprep.subr.bf16.mxu0 0
  %676 = vmatpush2.bf16.msra.mxu0 0
  %677 = vmatprep.subr.bf16.mxu0 0
  %678 = vmatpush2.bf16.msra.mxu0 0
  %679 = vmatprep.mubr.bf16.mxu0 0
  %680 = vmatmul.mubr.bf16.gmra.mxu0 %v370
  %v681 = vpop.f32.mrf.mxu0
  %v682 = vadd.f32 %v617, %v681
  %v683 = vpop.f32.mrf.mxu0
  %v684 = vpop.f32.mrf.mxu0
  %v685 = vadd.f32 %v620, %v684
  %v686 = vpop.f32.mrf.mxu0
  %687 = vdwg.mxu0
  %v688 = vld [vmem:[%s10 + $0x20] sm:$0xf]
  %v689 = vld [vmem:[%s10 + $0x24] sm:$0xf]
  %v690 = vld [vmem:[%s10 + $0x28] sm:$0xf]
  %v691 = vld [vmem:[%s10 + $0x2c] sm:$0xf]
  %v692 = vld [vmem:[%s10 + $0x30] sm:$0xf]
  %v693 = vld [vmem:[%s10 + $0x34] sm:$0xf]
  %v694 = vld [vmem:[%s10 + $0x38] sm:$0xf]
  %v695 = vld [vmem:[%s10 + $0x3c] sm:$0xf]
  %v704 = vunpack.c.l.b16 %v688
  %v705 = vunpack.c.l.b16 %v689
  %v706 = vunpack.c.l.b16 %v690
  %v707 = vunpack.c.l.b16 %v691
  %v708 = vunpack.c.l.b16 %v692
  %v709 = vunpack.c.l.b16 %v693
  %v710 = vunpack.c.l.b16 %v694
  %v711 = vunpack.c.l.b16 %v695
  %v712 = vpack.c.b16 %v705, %v704
  %v713 = vpack.c.b16 %v707, %v706
  %v714 = vpack.c.b16 %v709, %v708
  %v715 = vpack.c.b16 %v711, %v710
  %720 = vmatprep.subr.bf16.mxu0 0
  %721 = vmatpush1.bf16.msra.mxu0 0
  %722 = vmatprep.subr.bf16.mxu0 0
  %723 = vmatpush1.bf16.msra.mxu0 0
  %724 = vmatprep.subr.bf16.mxu0 0
  %725 = vmatpush1.bf16.msra.mxu0 0
  %726 = vmatprep.subr.bf16.mxu0 0
  %727 = vmatpush1.bf16.msra.mxu0 0
  %728 = vmatprep.subr.bf16.mxu0 0
  %729 = vmatpush1.bf16.msra.mxu0 %v715
  %730 = vmatprep.subr.bf16.mxu0 0
  %731 = vmatpush1.bf16.msra.mxu0 %v714
  %732 = vmatprep.subr.bf16.mxu0 0
  %733 = vmatpush1.bf16.msra.mxu0 %v713
  %734 = vmatprep.subr.bf16.mxu0 0
  %735 = vmatpush1.bf16.msra.mxu0 %v712
  %736 = vmatprep.subr.bf16.mxu0 0
  %737 = vmatpush2.bf16.msra.mxu0 0
  %738 = vmatprep.subr.bf16.mxu0 0
  %739 = vmatpush2.bf16.msra.mxu0 0
  %740 = vmatprep.subr.bf16.mxu0 0
  %741 = vmatpush2.bf16.msra.mxu0 0
  %742 = vmatprep.subr.bf16.mxu0 0
  %743 = vmatpush2.bf16.msra.mxu0 0
  %744 = vmatprep.subr.bf16.mxu0 0
  %745 = vmatpush2.bf16.msra.mxu0 0
  %746 = vmatprep.subr.bf16.mxu0 0
  %747 = vmatpush2.bf16.msra.mxu0 0
  %748 = vmatprep.subr.bf16.mxu0 0
  %749 = vmatpush2.bf16.msra.mxu0 0
  %750 = vmatprep.subr.bf16.mxu0 0
  %751 = vmatpush2.bf16.msra.mxu0 0
  %752 = vmatprep.mubr.bf16.mxu0 0
  %753 = vmatmul.mubr.bf16.gmra.mxu0 %v580
  %v754 = vpop.f32.mrf.mxu0
  %v755 = vadd.f32 0.0, %v754
  %v756 = vpop.f32.mrf.mxu0
  %v757 = vpop.f32.mrf.mxu0
  %v758 = vadd.f32 0.0, %v757
  %v759 = vpop.f32.mrf.mxu0
  %760 = vdwg.mxu0
  %v769 = vunpack.c.l.b16 %v310
  %v770 = vunpack.c.l.b16 %v311
  %v771 = vunpack.c.l.b16 %v312
  %v772 = vunpack.c.l.b16 %v313
  %v773 = vunpack.c.l.b16 %v314
  %v774 = vunpack.c.l.b16 %v315
  %v775 = vunpack.c.l.b16 %v316
  %v776 = vunpack.c.l.b16 %v317
  %v777 = vpack.c.b16 %v770, %v769
  %v778 = vpack.c.b16 %v772, %v771
  %v779 = vpack.c.b16 %v774, %v773
  %v780 = vpack.c.b16 %v776, %v775
  %785 = vmatprep.subr.bf16.mxu0 0
  %786 = vmatpush1.bf16.msra.mxu0 0
  %787 = vmatprep.subr.bf16.mxu0 0
  %788 = vmatpush1.bf16.msra.mxu0 0
  %789 = vmatprep.subr.bf16.mxu0 0
  %790 = vmatpush1.bf16.msra.mxu0 0
  %791 = vmatprep.subr.bf16.mxu0 0
  %792 = vmatpush1.bf16.msra.mxu0 0
  %793 = vmatprep.subr.bf16.mxu0 0
  %794 = vmatpush1.bf16.msra.mxu0 %v780
  %795 = vmatprep.subr.bf16.mxu0 0
  %796 = vmatpush1.bf16.msra.mxu0 %v779
  %797 = vmatprep.subr.bf16.mxu0 0
  %798 = vmatpush1.bf16.msra.mxu0 %v778
  %799 = vmatprep.subr.bf16.mxu0 0
  %800 = vmatpush1.bf16.msra.mxu0 %v777
  %801 = vmatprep.subr.bf16.mxu0 0
  %802 = vmatpush2.bf16.msra.mxu0 0
  %803 = vmatprep.subr.bf16.mxu0 0
  %804 = vmatpush2.bf16.msra.mxu0 0
  %805 = vmatprep.subr.bf16.mxu0 0
  %806 = vmatpush2.bf16.msra.mxu0 0
  %807 = vmatprep.subr.bf16.mxu0 0
  %808 = vmatpush2.bf16.msra.mxu0 0
  %809 = vmatprep.subr.bf16.mxu0 0
  %810 = vmatpush2.bf16.msra.mxu0 0
  %811 = vmatprep.subr.bf16.mxu0 0
  %812 = vmatpush2.bf16.msra.mxu0 0
  %813 = vmatprep.subr.bf16.mxu0 0
  %814 = vmatpush2.bf16.msra.mxu0 0
  %815 = vmatprep.subr.bf16.mxu0 0
  %816 = vmatpush2.bf16.msra.mxu0 0
  %817 = vmatprep.mubr.bf16.mxu0 0
  %818 = vmatmul.mubr.bf16.gmra.mxu0 %v370
  %v819 = vpop.f32.mrf.mxu0
  %v820 = vadd.f32 %v755, %v819
  %v821 = vpop.f32.mrf.mxu0
  %v822 = vpop.f32.mrf.mxu0
  %v823 = vadd.f32 %v758, %v822
  %v824 = vpop.f32.mrf.mxu0
  %825 = vdwg.mxu0
  %v826 = vld [vmem:[%s17 + $0x20] sm:$0xf]
  %v827 = vld [vmem:[%s17 + $0x24] sm:$0xf]
  %v828 = vld [vmem:[%s17 + $0x28] sm:$0xf]
  %v829 = vld [vmem:[%s17 + $0x2c] sm:$0xf]
  %v830 = vld [vmem:[%s17 + $0x30] sm:$0xf]
  %v831 = vld [vmem:[%s17 + $0x34] sm:$0xf]
  %v832 = vld [vmem:[%s17 + $0x38] sm:$0xf]
  %v833 = vld [vmem:[%s17 + $0x3c] sm:$0xf]
  %v842 = vunpack.c.l.b16 %v826
  %v843 = vunpack.c.l.b16 %v827
  %v844 = vunpack.c.l.b16 %v828
  %v845 = vunpack.c.l.b16 %v829
  %v846 = vunpack.c.l.b16 %v830
  %v847 = vunpack.c.l.b16 %v831
  %v848 = vunpack.c.l.b16 %v832
  %v849 = vunpack.c.l.b16 %v833
  %v850 = vpack.c.b16 %v843, %v842
  %v851 = vpack.c.b16 %v845, %v844
  %v852 = vpack.c.b16 %v847, %v846
  %v853 = vpack.c.b16 %v849, %v848
  %v859 = vsel %vm368, %v546, 0
  %861 = vmatprep.subr.bf16.mxu0 0
  %862 = vmatpush1.bf16.msra.mxu0 0
  %863 = vmatprep.subr.bf16.mxu0 0
  %864 = vmatpush1.bf16.msra.mxu0 0
  %865 = vmatprep.subr.bf16.mxu0 0
  %866 = vmatpush1.bf16.msra.mxu0 0
  %867 = vmatprep.subr.bf16.mxu0 0
  %868 = vmatpush1.bf16.msra.mxu0 0
  %869 = vmatprep.subr.bf16.mxu0 0
  %870 = vmatpush1.bf16.msra.mxu0 %v853
  %871 = vmatprep.subr.bf16.mxu0 0
  %872 = vmatpush1.bf16.msra.mxu0 %v852
  %873 = vmatprep.subr.bf16.mxu0 0
  %874 = vmatpush1.bf16.msra.mxu0 %v851
  %875 = vmatprep.subr.bf16.mxu0 0
  %876 = vmatpush1.bf16.msra.mxu0 %v850
  %877 = vmatprep.subr.bf16.mxu0 0
  %878 = vmatpush2.bf16.msra.mxu0 0
  %879 = vmatprep.subr.bf16.mxu0 0
  %880 = vmatpush2.bf16.msra.mxu0 0
  %881 = vmatprep.subr.bf16.mxu0 0
  %882 = vmatpush2.bf16.msra.mxu0 0
  %883 = vmatprep.subr.bf16.mxu0 0
  %884 = vmatpush2.bf16.msra.mxu0 0
  %885 = vmatprep.subr.bf16.mxu0 0
  %886 = vmatpush2.bf16.msra.mxu0 0
  %887 = vmatprep.subr.bf16.mxu0 0
  %888 = vmatpush2.bf16.msra.mxu0 0
  %889 = vmatprep.subr.bf16.mxu0 0
  %890 = vmatpush2.bf16.msra.mxu0 0
  %891 = vmatprep.subr.bf16.mxu0 0
  %892 = vmatpush2.bf16.msra.mxu0 0
  %893 = vmatprep.mubr.bf16.mxu0 0
  %894 = vmatmul.mubr.bf16.gmra.mxu0 %v859
  %v895 = vpop.f32.mrf.mxu0
  %v896 = vadd.f32 0.0, %v895
  %v897 = vpop.f32.mrf.mxu0
  %v898 = vpop.f32.mrf.mxu0
  %v899 = vpop.f32.mrf.mxu0
  %900 = vdwg.mxu0
  %v909 = vunpack.c.l.b16 %v318
  %v910 = vunpack.c.l.b16 %v319
  %v911 = vunpack.c.l.b16 %v320
  %v912 = vunpack.c.l.b16 %v321
  %v913 = vunpack.c.l.b16 %v322
  %v914 = vunpack.c.l.b16 %v323
  %v915 = vunpack.c.l.b16 %v324
  %v916 = vunpack.c.l.b16 %v325
  %v917 = vpack.c.b16 %v910, %v909
  %v918 = vpack.c.b16 %v912, %v911
  %v919 = vpack.c.b16 %v914, %v913
  %v920 = vpack.c.b16 %v916, %v915
  %v926 = vsel %vm368, %v301, 0
  %928 = vmatprep.subr.bf16.mxu0 0
  %929 = vmatpush1.bf16.msra.mxu0 0
  %930 = vmatprep.subr.bf16.mxu0 0
  %931 = vmatpush1.bf16.msra.mxu0 0
  %932 = vmatprep.subr.bf16.mxu0 0
  %933 = vmatpush1.bf16.msra.mxu0 0
  %934 = vmatprep.subr.bf16.mxu0 0
  %935 = vmatpush1.bf16.msra.mxu0 0
  %936 = vmatprep.subr.bf16.mxu0 0
  %937 = vmatpush1.bf16.msra.mxu0 %v920
  %938 = vmatprep.subr.bf16.mxu0 0
  %939 = vmatpush1.bf16.msra.mxu0 %v919
  %940 = vmatprep.subr.bf16.mxu0 0
  %941 = vmatpush1.bf16.msra.mxu0 %v918
  %942 = vmatprep.subr.bf16.mxu0 0
  %943 = vmatpush1.bf16.msra.mxu0 %v917
  %944 = vmatprep.subr.bf16.mxu0 0
  %945 = vmatpush2.bf16.msra.mxu0 0
  %946 = vmatprep.subr.bf16.mxu0 0
  %947 = vmatpush2.bf16.msra.mxu0 0
  %948 = vmatprep.subr.bf16.mxu0 0
  %949 = vmatpush2.bf16.msra.mxu0 0
  %950 = vmatprep.subr.bf16.mxu0 0
  %951 = vmatpush2.bf16.msra.mxu0 0
  %952 = vmatprep.subr.bf16.mxu0 0
  %953 = vmatpush2.bf16.msra.mxu0 0
  %954 = vmatprep.subr.bf16.mxu0 0
  %955 = vmatpush2.bf16.msra.mxu0 0
  %956 = vmatprep.subr.bf16.mxu0 0
  %957 = vmatpush2.bf16.msra.mxu0 0
  %958 = vmatprep.subr.bf16.mxu0 0
  %959 = vmatpush2.bf16.msra.mxu0 0
  %960 = vmatprep.mubr.bf16.mxu0 0
  %961 = vmatmul.mubr.bf16.gmra.mxu0 %v926
  %v962 = vpop.f32.mrf.mxu0
  %v963 = vadd.f32 %v896, %v962
  %v964 = vpop.f32.mrf.mxu0
  %v965 = vpop.f32.mrf.mxu0
  %v966 = vpop.f32.mrf.mxu0
  %967 = vdwg.mxu0
  %v968 = vld [vmem:[%s18 + $0x20] sm:$0xf]
  %v969 = vld [vmem:[%s18 + $0x24] sm:$0xf]
  %v970 = vld [vmem:[%s18 + $0x28] sm:$0xf]
  %v971 = vld [vmem:[%s18 + $0x2c] sm:$0xf]
  %v972 = vld [vmem:[%s18 + $0x30] sm:$0xf]
  %v973 = vld [vmem:[%s18 + $0x34] sm:$0xf]
  %v974 = vld [vmem:[%s18 + $0x38] sm:$0xf]
  %v975 = vld [vmem:[%s18 + $0x3c] sm:$0xf]
  %v984 = vunpack.c.l.b16 %v968
  %v985 = vunpack.c.l.b16 %v969
  %v986 = vunpack.c.l.b16 %v970
  %v987 = vunpack.c.l.b16 %v971
  %v988 = vunpack.c.l.b16 %v972
  %v989 = vunpack.c.l.b16 %v973
  %v990 = vunpack.c.l.b16 %v974
  %v991 = vunpack.c.l.b16 %v975
  %v992 = vpack.c.b16 %v985, %v984
  %v993 = vpack.c.b16 %v987, %v986
  %v994 = vpack.c.b16 %v989, %v988
  %v995 = vpack.c.b16 %v991, %v990
  %1000 = vmatprep.subr.bf16.mxu0 0
  %1001 = vmatpush1.bf16.msra.mxu0 0
  %1002 = vmatprep.subr.bf16.mxu0 0
  %1003 = vmatpush1.bf16.msra.mxu0 0
  %1004 = vmatprep.subr.bf16.mxu0 0
  %1005 = vmatpush1.bf16.msra.mxu0 0
  %1006 = vmatprep.subr.bf16.mxu0 0
  %1007 = vmatpush1.bf16.msra.mxu0 0
  %1008 = vmatprep.subr.bf16.mxu0 0
  %1009 = vmatpush1.bf16.msra.mxu0 %v995
  %1010 = vmatprep.subr.bf16.mxu0 0
  %1011 = vmatpush1.bf16.msra.mxu0 %v994
  %1012 = vmatprep.subr.bf16.mxu0 0
  %1013 = vmatpush1.bf16.msra.mxu0 %v993
  %1014 = vmatprep.subr.bf16.mxu0 0
  %1015 = vmatpush1.bf16.msra.mxu0 %v992
  %1016 = vmatprep.subr.bf16.mxu0 0
  %1017 = vmatpush2.bf16.msra.mxu0 0
  %1018 = vmatprep.subr.bf16.mxu0 0
  %1019 = vmatpush2.bf16.msra.mxu0 0
  %1020 = vmatprep.subr.bf16.mxu0 0
  %1021 = vmatpush2.bf16.msra.mxu0 0
  %1022 = vmatprep.subr.bf16.mxu0 0
  %1023 = vmatpush2.bf16.msra.mxu0 0
  %1024 = vmatprep.subr.bf16.mxu0 0
  %1025 = vmatpush2.bf16.msra.mxu0 0
  %1026 = vmatprep.subr.bf16.mxu0 0
  %1027 = vmatpush2.bf16.msra.mxu0 0
  %1028 = vmatprep.subr.bf16.mxu0 0
  %1029 = vmatpush2.bf16.msra.mxu0 0
  %1030 = vmatprep.subr.bf16.mxu0 0
  %1031 = vmatpush2.bf16.msra.mxu0 0
  %1032 = vmatprep.mubr.bf16.mxu0 0
  %1033 = vmatmul.mubr.bf16.gmra.mxu0 %v859
  %v1034 = vpop.f32.mrf.mxu0
  %v1035 = vadd.f32 0.0, %v1034
  %v1036 = vpop.f32.mrf.mxu0
  %v1037 = vpop.f32.mrf.mxu0
  %v1038 = vpop.f32.mrf.mxu0
  %1039 = vdwg.mxu0
  %v1048 = vunpack.c.l.b16 %v326
  %v1049 = vunpack.c.l.b16 %v327
  %v1050 = vunpack.c.l.b16 %v328
  %v1051 = vunpack.c.l.b16 %v329
  %v1052 = vunpack.c.l.b16 %v330
  %v1053 = vunpack.c.l.b16 %v331
  %v1054 = vunpack.c.l.b16 %v332
  %v1055 = vunpack.c.l.b16 %v333
  %v1056 = vpack.c.b16 %v1049, %v1048
  %v1057 = vpack.c.b16 %v1051, %v1050
  %v1058 = vpack.c.b16 %v1053, %v1052
  %v1059 = vpack.c.b16 %v1055, %v1054
  %1064 = vmatprep.subr.bf16.mxu0 0
  %1065 = vmatpush1.bf16.msra.mxu0 0
  %1066 = vmatprep.subr.bf16.mxu0 0
  %1067 = vmatpush1.bf16.msra.mxu0 0
  %1068 = vmatprep.subr.bf16.mxu0 0
  %1069 = vmatpush1.bf16.msra.mxu0 0
  %1070 = vmatprep.subr.bf16.mxu0 0
  %1071 = vmatpush1.bf16.msra.mxu0 0
  %1072 = vmatprep.subr.bf16.mxu0 0
  %1073 = vmatpush1.bf16.msra.mxu0 %v1059
  %1074 = vmatprep.subr.bf16.mxu0 0
  %1075 = vmatpush1.bf16.msra.mxu0 %v1058
  %1076 = vmatprep.subr.bf16.mxu0 0
  %1077 = vmatpush1.bf16.msra.mxu0 %v1057
  %1078 = vmatprep.subr.bf16.mxu0 0
  %1079 = vmatpush1.bf16.msra.mxu0 %v1056
  %1080 = vmatprep.subr.bf16.mxu0 0
  %1081 = vmatpush2.bf16.msra.mxu0 0
  %1082 = vmatprep.subr.bf16.mxu0 0
  %1083 = vmatpush2.bf16.msra.mxu0 0
  %1084 = vmatprep.subr.bf16.mxu0 0
  %1085 = vmatpush2.bf16.msra.mxu0 0
  %1086 = vmatprep.subr.bf16.mxu0 0
  %1087 = vmatpush2.bf16.msra.mxu0 0
  %1088 = vmatprep.subr.bf16.mxu0 0
  %1089 = vmatpush2.bf16.msra.mxu0 0
  %1090 = vmatprep.subr.bf16.mxu0 0
  %1091 = vmatpush2.bf16.msra.mxu0 0
  %1092 = vmatprep.subr.bf16.mxu0 0
  %1093 = vmatpush2.bf16.msra.mxu0 0
  %1094 = vmatprep.subr.bf16.mxu0 0
  %1095 = vmatpush2.bf16.msra.mxu0 0
  %1096 = vmatprep.mubr.bf16.mxu0 0
  %1097 = vmatmul.mubr.bf16.gmra.mxu0 %v926
  %v1098 = vpop.f32.mrf.mxu0
  %v1099 = vadd.f32 %v1035, %v1098
  %v1100 = vpop.f32.mrf.mxu0
  %v1101 = vpop.f32.mrf.mxu0
  %v1102 = vpop.f32.mrf.mxu0
  %1103 = vdwg.mxu0
  %v1104 = vld [vmem:[%s13] sm:$0x1]
  %v1106 = vlaneseq
  %v1107 = vshrl.u32 %v1106, 7
  %v1108 = vsub.s32 0, %v1107
  %v1109 = vrot.slane %v1104, %v1108
  %v1111 = vadd.f32 %v682, %v1109
  %v1112 = vadd.f32 %v685, %v1109
  %v1113 = vmax.f32 %v1111, 0.0
  %v1114 = vmax.f32 %v1112, 0.0
  %v1115 = vpack.c.bf16 %v1114, %v1113
  %v1116 = vld [vmem:[%s11] sm:$0xf]
  %v1117 = vld [vmem:[%s11 + $0x4] sm:$0xf]
  %v1118 = vld [vmem:[%s11 + $0x8] sm:$0xf]
  %v1119 = vld [vmem:[%s11 + $0xc] sm:$0xf]
  %v1120 = vld [vmem:[%s11 + $0x10] sm:$0xf]
  %v1121 = vld [vmem:[%s11 + $0x14] sm:$0xf]
  %v1122 = vld [vmem:[%s11 + $0x18] sm:$0xf]
  %v1123 = vld [vmem:[%s11 + $0x1c] sm:$0xf]
  %v1124 = vld [vmem:[%s14] sm:$0x1]
  %v1126 = vlaneseq
  %v1127 = vshrl.u32 %v1126, 7
  %v1128 = vsub.s32 0, %v1127
  %v1129 = vrot.slane %v1124, %v1128
  %v1139 = vunpack.c.l.b16 %v1116
  %v1140 = vunpack.c.l.b16 %v1117
  %v1141 = vunpack.c.l.b16 %v1118
  %v1142 = vunpack.c.l.b16 %v1119
  %v1143 = vunpack.c.l.b16 %v1120
  %v1144 = vunpack.c.l.b16 %v1121
  %v1145 = vunpack.c.l.b16 %v1122
  %v1146 = vunpack.c.l.b16 %v1123
  %v1147 = vpack.c.b16 %v1140, %v1139
  %v1148 = vpack.c.b16 %v1142, %v1141
  %v1149 = vpack.c.b16 %v1144, %v1143
  %v1150 = vpack.c.b16 %v1146, %v1145
  %v1156 = vsel %vm368, %v1115, 0
  %1158 = vmatprep.subr.bf16.mxu0 0
  %1159 = vmatpush1.bf16.msra.mxu0 0
  %1160 = vmatprep.subr.bf16.mxu0 0
  %1161 = vmatpush1.bf16.msra.mxu0 0
  %1162 = vmatprep.subr.bf16.mxu0 0
  %1163 = vmatpush1.bf16.msra.mxu0 0
  %1164 = vmatprep.subr.bf16.mxu0 0
  %1165 = vmatpush1.bf16.msra.mxu0 0
  %1166 = vmatprep.subr.bf16.mxu0 0
  %1167 = vmatpush1.bf16.msra.mxu0 %v1150
  %1168 = vmatprep.subr.bf16.mxu0 0
  %1169 = vmatpush1.bf16.msra.mxu0 %v1149
  %1170 = vmatprep.subr.bf16.mxu0 0
  %1171 = vmatpush1.bf16.msra.mxu0 %v1148
  %1172 = vmatprep.subr.bf16.mxu0 0
  %1173 = vmatpush1.bf16.msra.mxu0 %v1147
  %1174 = vmatprep.subr.bf16.mxu0 0
  %1175 = vmatpush2.bf16.msra.mxu0 0
  %1176 = vmatprep.subr.bf16.mxu0 0
  %1177 = vmatpush2.bf16.msra.mxu0 0
  %1178 = vmatprep.subr.bf16.mxu0 0
  %1179 = vmatpush2.bf16.msra.mxu0 0
  %1180 = vmatprep.subr.bf16.mxu0 0
  %1181 = vmatpush2.bf16.msra.mxu0 0
  %1182 = vmatprep.subr.bf16.mxu0 0
  %1183 = vmatpush2.bf16.msra.mxu0 0
  %1184 = vmatprep.subr.bf16.mxu0 0
  %1185 = vmatpush2.bf16.msra.mxu0 0
  %1186 = vmatprep.subr.bf16.mxu0 0
  %1187 = vmatpush2.bf16.msra.mxu0 0
  %1188 = vmatprep.subr.bf16.mxu0 0
  %1189 = vmatpush2.bf16.msra.mxu0 0
  %1190 = vmatprep.mubr.bf16.mxu0 0
  %1191 = vmatmul.mubr.bf16.gmra.mxu0 %v1156
  %v1192 = vpop.f32.mrf.mxu0
  %v1193 = vadd.f32 %v1129, %v1192
  %v1194 = vpop.f32.mrf.mxu0
  %v1195 = vpop.f32.mrf.mxu0
  %v1196 = vadd.f32 %v1129, %v1195
  %v1197 = vpop.f32.mrf.mxu0
  %1198 = vdwg.mxu0
  %v1199 = vmax.f32 %v1193, 0.0
  %v1200 = vmax.f32 %v1196, 0.0
  %v1201 = vpack.c.bf16 %v1200, %v1199
  %v1202 = vld [vmem:[%s12] sm:$0xf]
  %v1203 = vld [vmem:[%s12 + $0x4] sm:$0xf]
  %v1204 = vld [vmem:[%s12 + $0x8] sm:$0xf]
  %v1205 = vld [vmem:[%s12 + $0xc] sm:$0xf]
  %v1206 = vld [vmem:[%s12 + $0x10] sm:$0xf]
  %v1207 = vld [vmem:[%s12 + $0x14] sm:$0xf]
  %v1208 = vld [vmem:[%s12 + $0x18] sm:$0xf]
  %v1209 = vld [vmem:[%s12 + $0x1c] sm:$0xf]
  %v1210 = vld [vmem:[%s15] sm:$0x1]
  %v1212 = vlaneseq
  %v1213 = vshrl.u32 %v1212, 7
  %v1214 = vsub.s32 0, %v1213
  %v1215 = vrot.slane %v1210, %v1214
  %v1225 = vunpack.c.l.b16 %v1202
  %v1226 = vunpack.c.l.b16 %v1203
  %v1227 = vunpack.c.l.b16 %v1204
  %v1228 = vunpack.c.l.b16 %v1205
  %v1229 = vunpack.c.l.b16 %v1206
  %v1230 = vunpack.c.l.b16 %v1207
  %v1231 = vunpack.c.l.b16 %v1208
  %v1232 = vunpack.c.l.b16 %v1209
  %v1233 = vpack.c.b16 %v1226, %v1225
  %v1234 = vpack.c.b16 %v1228, %v1227
  %v1235 = vpack.c.b16 %v1230, %v1229
  %v1236 = vpack.c.b16 %v1232, %v1231
  %v1242 = vsel %vm368, %v1201, 0
  %1244 = vmatprep.subr.bf16.mxu0 0
  %1245 = vmatpush1.bf16.msra.mxu0 0
  %1246 = vmatprep.subr.bf16.mxu0 0
  %1247 = vmatpush1.bf16.msra.mxu0 0
  %1248 = vmatprep.subr.bf16.mxu0 0
  %1249 = vmatpush1.bf16.msra.mxu0 0
  %1250 = vmatprep.subr.bf16.mxu0 0
  %1251 = vmatpush1.bf16.msra.mxu0 0
  %1252 = vmatprep.subr.bf16.mxu0 0
  %1253 = vmatpush1.bf16.msra.mxu0 %v1236
  %1254 = vmatprep.subr.bf16.mxu0 0
  %1255 = vmatpush1.bf16.msra.mxu0 %v1235
  %1256 = vmatprep.subr.bf16.mxu0 0
  %1257 = vmatpush1.bf16.msra.mxu0 %v1234
  %1258 = vmatprep.subr.bf16.mxu0 0
  %1259 = vmatpush1.bf16.msra.mxu0 %v1233
  %1260 = vmatprep.subr.bf16.mxu0 0
  %1261 = vmatpush2.bf16.msra.mxu0 0
  %1262 = vmatprep.subr.bf16.mxu0 0
  %1263 = vmatpush2.bf16.msra.mxu0 0
  %1264 = vmatprep.subr.bf16.mxu0 0
  %1265 = vmatpush2.bf16.msra.mxu0 0
  %1266 = vmatprep.subr.bf16.mxu0 0
  %1267 = vmatpush2.bf16.msra.mxu0 0
  %1268 = vmatprep.subr.bf16.mxu0 0
  %1269 = vmatpush2.bf16.msra.mxu0 0
  %1270 = vmatprep.subr.bf16.mxu0 0
  %1271 = vmatpush2.bf16.msra.mxu0 0
  %1272 = vmatprep.subr.bf16.mxu0 0
  %1273 = vmatpush2.bf16.msra.mxu0 0
  %1274 = vmatprep.subr.bf16.mxu0 0
  %1275 = vmatpush2.bf16.msra.mxu0 0
  %1276 = vmatprep.mubr.bf16.mxu0 0
  %1277 = vmatmul.mubr.bf16.gmra.mxu0 %v1242
  %v1278 = vpop.f32.mrf.mxu0
  %v1279 = vadd.f32 %v1215, %v1278
  %v1280 = vpop.f32.mrf.mxu0
  %v1281 = vpop.f32.mrf.mxu0
  %v1282 = vadd.f32 %v1215, %v1281
  %v1283 = vpop.f32.mrf.mxu0
  %1284 = vdwg.mxu0
  %v1285 = vmax.f32 %v1279, 0.0
  %v1286 = vmax.f32 %v1282, 0.0
  %v1287 = vadd.f32 %v1285, %v820
  %v1288 = vadd.f32 %v1286, %v823
  %v1289 = vld [vmem:[%s16] sm:$0x1]
  %v1291 = vlaneseq
  %v1292 = vshrl.u32 %v1291, 7
  %v1293 = vsub.s32 0, %v1292
  %v1294 = vrot.slane %v1289, %v1293
  %v1296 = vadd.f32 %v1287, %v1294
  %v1297 = vadd.f32 %v1288, %v1294
  %v1298 = vld [vmem:[%s21] sm:$0x1]
  %v1300 = vlaneseq
  %v1301 = vshrl.u32 %v1300, 7
  %v1302 = vsub.s32 0, %v1301
  %v1303 = vrot.slane %v1298, %v1302
  %v1305 = vadd.f32 %v963, %v1303
  %v1306 = vmax.f32 %v1305, 0.0
  %v1307 = vpack.c.bf16 %v1306, %v1306
  %v1308 = vld [vmem:[%s19] sm:$0xf]
  %v1309 = vld [vmem:[%s19 + $0x4] sm:$0xf]
  %v1310 = vld [vmem:[%s19 + $0x8] sm:$0xf]
  %v1311 = vld [vmem:[%s19 + $0xc] sm:$0xf]
  %v1312 = vld [vmem:[%s19 + $0x10] sm:$0xf]
  %v1313 = vld [vmem:[%s19 + $0x14] sm:$0xf]
  %v1314 = vld [vmem:[%s19 + $0x18] sm:$0xf]
  %v1315 = vld [vmem:[%s19 + $0x1c] sm:$0xf]
  %v1316 = vld [vmem:[%s22] sm:$0x1]
  %v1318 = vlaneseq
  %v1319 = vshrl.u32 %v1318, 7
  %v1320 = vsub.s32 0, %v1319
  %v1321 = vrot.slane %v1316, %v1320
  %v1331 = vunpack.c.l.b16 %v1308
  %v1332 = vunpack.c.l.b16 %v1309
  %v1333 = vunpack.c.l.b16 %v1310
  %v1334 = vunpack.c.l.b16 %v1311
  %v1335 = vunpack.c.l.b16 %v1312
  %v1336 = vunpack.c.l.b16 %v1313
  %v1337 = vunpack.c.l.b16 %v1314
  %v1338 = vunpack.c.l.b16 %v1315
  %v1339 = vpack.c.b16 %v1332, %v1331
  %v1340 = vpack.c.b16 %v1334, %v1333
  %v1341 = vpack.c.b16 %v1336, %v1335
  %v1342 = vpack.c.b16 %v1338, %v1337
  %v1348 = vsel %vm368, %v1307, 0
  %1350 = vmatprep.subr.bf16.mxu0 0
  %1351 = vmatpush1.bf16.msra.mxu0 0
  %1352 = vmatprep.subr.bf16.mxu0 0
  %1353 = vmatpush1.bf16.msra.mxu0 0
  %1354 = vmatprep.subr.bf16.mxu0 0
  %1355 = vmatpush1.bf16.msra.mxu0 0
  %1356 = vmatprep.subr.bf16.mxu0 0
  %1357 = vmatpush1.bf16.msra.mxu0 0
  %1358 = vmatprep.subr.bf16.mxu0 0
  %1359 = vmatpush1.bf16.msra.mxu0 %v1342
  %1360 = vmatprep.subr.bf16.mxu0 0
  %1361 = vmatpush1.bf16.msra.mxu0 %v1341
  %1362 = vmatprep.subr.bf16.mxu0 0
  %1363 = vmatpush1.bf16.msra.mxu0 %v1340
  %1364 = vmatprep.subr.bf16.mxu0 0
  %1365 = vmatpush1.bf16.msra.mxu0 %v1339
  %1366 = vmatprep.subr.bf16.mxu0 0
  %1367 = vmatpush2.bf16.msra.mxu0 0
  %1368 = vmatprep.subr.bf16.mxu0 0
  %1369 = vmatpush2.bf16.msra.mxu0 0
  %1370 = vmatprep.subr.bf16.mxu0 0
  %1371 = vmatpush2.bf16.msra.mxu0 0
  %1372 = vmatprep.subr.bf16.mxu0 0
  %1373 = vmatpush2.bf16.msra.mxu0 0
  %1374 = vmatprep.subr.bf16.mxu0 0
  %1375 = vmatpush2.bf16.msra.mxu0 0
  %1376 = vmatprep.subr.bf16.mxu0 0
  %1377 = vmatpush2.bf16.msra.mxu0 0
  %1378 = vmatprep.subr.bf16.mxu0 0
  %1379 = vmatpush2.bf16.msra.mxu0 0
  %1380 = vmatprep.subr.bf16.mxu0 0
  %1381 = vmatpush2.bf16.msra.mxu0 0
  %1382 = vmatprep.mubr.bf16.mxu0 0
  %1383 = vmatmul.mubr.bf16.gmra.mxu0 %v1348
  %v1384 = vpop.f32.mrf.mxu0
  %v1385 = vadd.f32 %v1321, %v1384
  %v1386 = vpop.f32.mrf.mxu0
  %v1387 = vpop.f32.mrf.mxu0
  %v1388 = vpop.f32.mrf.mxu0
  %1389 = vdwg.mxu0
  %v1390 = vmax.f32 %v1385, 0.0
  %v1391 = vpack.c.bf16 %v1390, %v1390
  %v1392 = vld [vmem:[%s20] sm:$0xf]
  %v1393 = vld [vmem:[%s20 + $0x4] sm:$0xf]
  %v1394 = vld [vmem:[%s20 + $0x8] sm:$0xf]
  %v1395 = vld [vmem:[%s20 + $0xc] sm:$0xf]
  %v1396 = vld [vmem:[%s20 + $0x10] sm:$0xf]
  %v1397 = vld [vmem:[%s20 + $0x14] sm:$0xf]
  %v1398 = vld [vmem:[%s20 + $0x18] sm:$0xf]
  %v1399 = vld [vmem:[%s20 + $0x1c] sm:$0xf]
  %v1400 = vld [vmem:[%s23] sm:$0x1]
  %v1402 = vlaneseq
  %v1403 = vshrl.u32 %v1402, 7
  %v1404 = vsub.s32 0, %v1403
  %v1405 = vrot.slane %v1400, %v1404
  %v1415 = vunpack.c.l.b16 %v1392
  %v1416 = vunpack.c.l.b16 %v1393
  %v1417 = vunpack.c.l.b16 %v1394
  %v1418 = vunpack.c.l.b16 %v1395
  %v1419 = vunpack.c.l.b16 %v1396
  %v1420 = vunpack.c.l.b16 %v1397
  %v1421 = vunpack.c.l.b16 %v1398
  %v1422 = vunpack.c.l.b16 %v1399
  %v1423 = vpack.c.b16 %v1416, %v1415
  %v1424 = vpack.c.b16 %v1418, %v1417
  %v1425 = vpack.c.b16 %v1420, %v1419
  %v1426 = vpack.c.b16 %v1422, %v1421
  %v1432 = vsel %vm368, %v1391, 0
  %1434 = vmatprep.subr.bf16.mxu0 0
  %1435 = vmatpush1.bf16.msra.mxu0 0
  %1436 = vmatprep.subr.bf16.mxu0 0
  %1437 = vmatpush1.bf16.msra.mxu0 0
  %1438 = vmatprep.subr.bf16.mxu0 0
  %1439 = vmatpush1.bf16.msra.mxu0 0
  %1440 = vmatprep.subr.bf16.mxu0 0
  %1441 = vmatpush1.bf16.msra.mxu0 0
  %1442 = vmatprep.subr.bf16.mxu0 0
  %1443 = vmatpush1.bf16.msra.mxu0 %v1426
  %1444 = vmatprep.subr.bf16.mxu0 0
  %1445 = vmatpush1.bf16.msra.mxu0 %v1425
  %1446 = vmatprep.subr.bf16.mxu0 0
  %1447 = vmatpush1.bf16.msra.mxu0 %v1424
  %1448 = vmatprep.subr.bf16.mxu0 0
  %1449 = vmatpush1.bf16.msra.mxu0 %v1423
  %1450 = vmatprep.subr.bf16.mxu0 0
  %1451 = vmatpush2.bf16.msra.mxu0 0
  %1452 = vmatprep.subr.bf16.mxu0 0
  %1453 = vmatpush2.bf16.msra.mxu0 0
  %1454 = vmatprep.subr.bf16.mxu0 0
  %1455 = vmatpush2.bf16.msra.mxu0 0
  %1456 = vmatprep.subr.bf16.mxu0 0
  %1457 = vmatpush2.bf16.msra.mxu0 0
  %1458 = vmatprep.subr.bf16.mxu0 0
  %1459 = vmatpush2.bf16.msra.mxu0 0
  %1460 = vmatprep.subr.bf16.mxu0 0
  %1461 = vmatpush2.bf16.msra.mxu0 0
  %1462 = vmatprep.subr.bf16.mxu0 0
  %1463 = vmatpush2.bf16.msra.mxu0 0
  %1464 = vmatprep.subr.bf16.mxu0 0
  %1465 = vmatpush2.bf16.msra.mxu0 0
  %1466 = vmatprep.mubr.bf16.mxu0 0
  %1467 = vmatmul.mubr.bf16.gmra.mxu0 %v1432
  %v1468 = vpop.f32.mrf.mxu0
  %v1469 = vadd.f32 %v1405, %v1468
  %v1470 = vpop.f32.mrf.mxu0
  %v1471 = vpop.f32.mrf.mxu0
  %v1472 = vpop.f32.mrf.mxu0
  %1473 = vdwg.mxu0
  %v1474 = vmax.f32 %v1469, 0.0
  %v1475 = vadd.f32 %v1474, %v1099
  %v1476 = vld [vmem:[%s24] sm:$0x1]
  %v1478 = vlaneseq
  %v1479 = vshrl.u32 %v1478, 7
  %v1480 = vsub.s32 0, %v1479
  %v1481 = vrot.slane %v1476, %v1480
  %v1483 = vadd.f32 %v1475, %v1481
  %v1484 = vpack.c.bf16 %v1297, %v1296
  %v1486 = vunpack.c.l.b16 %v1484
  %v1487 = vunpack.c.h.b16 %v1484
  %v1488 = vpack.c.b16 %v1486, %v1486
  %v1489 = vpack.c.b16 %v1487, %v1487
  %vm1492 = vcmask 519168
  %1493 = vst.msk [vmem:[%s25] sm:$0xf] %vm1492, %v1488
  %1494 = vst.msk [vmem:[%s25 + $0x4] sm:$0xf] %vm1492, %v1489
  %v1495 = vpack.c.bf16 %v1483, %v1483
  %vm1496 = vcmask 516096
  %1497 = vst.msk [vmem:[%s26] sm:$0x1] %vm1496, %v1495
  // Predicated region
  $region102: #{encoder_forward.1} parent=0 // pred_check
    _
  $region103: #{encoder_forward.1} parent=0 // pred_check_branch
    %1499 = sbr.rel (0) target = $region105
  $region104: #{encoder_forward.1} parent=0 // pred_region
    _
  $region105: #{encoder_forward.1} parent=0 // pred_fallthru
    _
  // Predicated region
  $region106: #{encoder_forward.1} parent=0 // pred_check
    _
  $region107: #{encoder_forward.1} parent=0 // pred_check_branch
    %1501 = sbr.rel (0) target = $region109
  $region108: #{encoder_forward.1} parent=0 // pred_region
    _
  $region109: #{encoder_forward.1} parent=0 // pred_fallthru
    _
  // Predicated region
  $region110: #{encoder_forward.1} parent=0 // pred_check
    _
  $region111: #{encoder_forward.1} parent=0 // pred_check_branch
    %1503 = sbr.rel (0) target = $region113
  $region112: #{encoder_forward.1} parent=0 // pred_region
    _
  $region113: #{encoder_forward.1} parent=0 // pred_fallthru
    _
  // Predicated region
  $region114: #{encoder_forward.1} parent=0 // pred_check
    _
  $region115: #{encoder_forward.1} parent=0 // pred_check_branch
    %1505 = sbr.rel (0) target = $region117
  $region116: #{encoder_forward.1} parent=0 // pred_region
    _
  $region117: #{encoder_forward.1} parent=0 // pred_fallthru
    _

</llo_original>
